<compile_context>
chip_gen: v6e
topology: v6e:2x2x1
jax: 0.10.0
libtpu: 0.0.40
codegen_flags: <defaults>
</compile_context>

<pallas_src>
import functools

import jax
import jax.numpy as jnp
from jax.experimental import pallas as pl
from jax.experimental.pallas import tpu as pltpu


def _lstm_kernel(x_ref, h0_ref, c0_ref, wih_ref, whh_ref, b_ref,
                 h_out_ref, c_out_ref, xproj_scr, *, chunk_steps, bp):
    """One grid step == one time chunk of `chunk_steps` timesteps.

    x_ref:    (chunk_steps * bp, D)   time-major, flattened (t-major, batch minor)
    h0/c0:    (bp, H)                 initial state
    wih_ref:  (D, 4H)   whh_ref: (H, 4H)   b_ref: (1, 4H)   (b_ih + b_hh)
    h_out/c_out: (bp, H)              constant-index blocks -> carried state
    xproj_scr:(chunk_steps * bp, 4H)  hoisted input projection for the chunk
    """
    # Initialize the carried state (resident output blocks) on the first chunk.
    @pl.when(pl.program_id(0) == 0)
    def _():
        h_out_ref[...] = h0_ref[...]
        c_out_ref[...] = c0_ref[...]

    H = h_out_ref.shape[-1]
    mm_dtype = whh_ref.dtype   # bf16 or f32 matmul operands

    # Hoisted input projection for the whole chunk: one well-shaped matmul
    # (MXU-friendly) + one broadcast bias add, removed from the serial path.
    x_mm = x_ref[...].astype(mm_dtype)
    xproj_scr[...] = (
        jnp.dot(x_mm, wih_ref[...], preferred_element_type=jnp.float32)
        + b_ref[...])

    def step(t, carry):
        h, c = carry                                        # f32 (bp, H)
        row0 = pl.multiple_of(t * bp, bp)                   # sublane aligned
        xp_t = xproj_scr[pl.ds(row0, bp), :]                # (bp, 4H), f32
        gates = xp_t + jnp.dot(h.astype(mm_dtype), whh_ref[...],
                               preferred_element_type=jnp.float32)
        # PyTorch gate layout along the 4H axis: [i, f, g, o].
        # NOTE: slices are lane aligned because H is a multiple of 128.
        i_g = jax.nn.sigmoid(gates[:, 0 * H:1 * H])
        f_g = jax.nn.sigmoid(gates[:, 1 * H:2 * H])
        g_g = jnp.tanh(gates[:, 2 * H:3 * H])
        o_g = jax.nn.sigmoid(gates[:, 3 * H:4 * H])
        c_new = f_g * c + i_g * g_g
        h_new = o_g * jnp.tanh(c_new)
        return h_new, c_new

    h, c = jax.lax.fori_loop(
        0, chunk_steps, step, (h_out_ref[...], c_out_ref[...]),
        unroll=True if chunk_steps <= 16 else 4)

    h_out_ref[...] = h
    c_out_ref[...] = c


def _pick_time_chunk(T, bp, gate_width, max_scratch_bytes=8 << 20):
    """Chunk the time axis so the hoisted-projection scratch stays small.

    Returns a divisor of T (so no masking is needed).  For small T this is T
    itself, i.e. a single grid step.
    """
    tc_cap = max(1, max_scratch_bytes // (bp * gate_width * 4))
    if T <= tc_cap:
        return T
    for tc in range(tc_cap, 0, -1):
        if T % tc == 0:
            return tc
    return 1


@functools.partial(jax.jit, static_argnames=("batch_size", "use_bf16"))
def lstm_forward(input_seq, hidden, params, *, batch_size, use_bf16=True):
    """Matches LSTM.forward: returns (sigmoid(linear(h_T))[:, 0], (h_n, c_n))."""
    w_ih, w_hh, b_ih, b_hh, w_lin, b_lin = params
    h0, c0 = hidden                       # each (n_layers=1, batch_size, H)

    valid = input_seq.shape[0]
    if valid != batch_size:
        # Mirror the torch.zeros padding branch: pad the batch with zeros.
        pad = jnp.zeros((batch_size - valid,) + input_seq.shape[1:],
                        input_seq.dtype)
        input_seq = jnp.concatenate([input_seq, pad], axis=0)

    B, T, D = input_seq.shape
    H = h0.shape[-1]
    C = w_lin.shape[0]

    # Pad batch to a multiple of 8 sublanes for aligned in-kernel slicing.
    Bp = max(8, ((B + 7) // 8) * 8)
    mm_dtype = jnp.bfloat16 if use_bf16 else jnp.float32

    x_f32 = input_seq.astype(jnp.float32)
    if Bp != B:
        x_f32 = jnp.concatenate(
            [x_f32, jnp.zeros((Bp - B, T, D), jnp.float32)], axis=0)
    # Time-major, flattened: row t*Bp + b  ==  (timestep t, batch row b).
    x_flat = jnp.transpose(x_f32, (1, 0, 2)).reshape(T * Bp, D)

    def pad_state(s):
        s2 = s[0].astype(jnp.float32)                       # (B, H)
        if Bp != B:
            s2 = jnp.concatenate(
                [s2, jnp.zeros((Bp - B, H), jnp.float32)], axis=0)
        return s2
    h0_p = pad_state(h0)
    c0_p = pad_state(c0)

    wih_mm = jnp.transpose(w_ih).astype(mm_dtype)           # (D, 4H)
    whh_mm = jnp.transpose(w_hh).astype(mm_dtype)           # (H, 4H)
    bias = (b_ih + b_hh).astype(jnp.float32).reshape(1, 4 * H)

    TC = _pick_time_chunk(T, Bp, 4 * H)
    num_chunks = T // TC
    full2d = lambda c: (0, 0)

    kernel = functools.partial(_lstm_kernel, chunk_steps=TC, bp=Bp)

    h_n, c_n = pl.pallas_call(
        kernel,
        out_shape=(
            jax.ShapeDtypeStruct((Bp, H), jnp.float32),
            jax.ShapeDtypeStruct((Bp, H), jnp.float32),
        ),
        grid_spec=pltpu.PrefetchScalarGridSpec(
            num_scalar_prefetch=0,
            grid=(num_chunks,),
            in_specs=[
                pl.BlockSpec((TC * Bp, D), lambda c: (c, 0)),   # x chunk
                pl.BlockSpec((Bp, H), full2d),                  # h0
                pl.BlockSpec((Bp, H), full2d),                  # c0
                pl.BlockSpec((D, 4 * H), full2d),               # W_ih^T
                pl.BlockSpec((H, 4 * H), full2d),               # W_hh^T
                pl.BlockSpec((1, 4 * H), full2d),               # bias
            ],
            out_specs=[
                pl.BlockSpec((Bp, H), full2d),                  # h_n (carried)
                pl.BlockSpec((Bp, H), full2d),                  # c_n (carried)
            ],
            scratch_shapes=[
                pltpu.VMEM((TC * Bp, 4 * H), jnp.float32),      # hoisted xproj
            ],
        ),
        compiler_params=pltpu.CompilerParams(
            dimension_semantics=("arbitrary",)),                # recurrence
    )(x_flat, h0_p, c0_p, wih_mm, whh_mm, bias)

    h_n = h_n[:B]
    c_n = c_n[:B]

    # Linear(H -> C) + sigmoid head applied to the last hidden state only
    # (pred[:, -1, 0] depends only on h_T).  Done in the wrapper: a 1-lane
    # output would force masked stores inside the kernel.
    logits = (h_n[:valid] @ jnp.transpose(w_lin).astype(jnp.float32)
              + b_lin.astype(jnp.float32).reshape(1, C))
    pred_last = jax.nn.sigmoid(logits)[:, 0]                    # (valid,)

    hidden_out = (h_n[None, ...], c_n[None, ...])               # (1, B, H) each
    return pred_last, hidden_out


def lstm_forward_ref(input_seq, hidden, params):
    """Pure-JAX f32 reference (lax.scan) for correctness checking."""
    w_ih, w_hh, b_ih, b_hh, w_lin, b_lin = params
    h0, c0 = hidden
    H = h0.shape[-1]
    x_tm = jnp.transpose(input_seq, (1, 0, 2))

    def step(carry, x_t):
        h, c = carry
        gates = x_t @ w_ih.T + b_ih + h @ w_hh.T + b_hh
        i = jax.nn.sigmoid(gates[:, 0 * H:1 * H])
        f = jax.nn.sigmoid(gates[:, 1 * H:2 * H])
        g = jnp.tanh(gates[:, 2 * H:3 * H])
        o = jax.nn.sigmoid(gates[:, 3 * H:4 * H])
        c_new = f * c + i * g
        h_new = o * jnp.tanh(c_new)
        return (h_new, c_new), h_new

    (h_n, c_n), hs = jax.lax.scan(step, (h0[0], c0[0]), x_tm)
    preds = jax.nn.sigmoid(hs @ w_lin.T + b_lin)          # (T, B, C)
    return preds[-1, :, 0], (h_n[None], c_n[None])


if __name__ == "__main__":
    # Small shapes consistent with the module (input_dim / hidden_dim scaled down).
    B, T, D, H, C = 2, 8, 128, 128, 1   # batch=2, seq=8, input_dim=128, hidden=128, cls_num=1

    key = jax.random.PRNGKey(0)
    ks = jax.random.split(key, 8)
    bound = 1.0 / jnp.sqrt(H)
    w_ih = jax.random.uniform(ks[0], (4 * H, D), jnp.float32, -bound, bound)
    w_hh = jax.random.uniform(ks[1], (4 * H, H), jnp.float32, -bound, bound)
    b_ih = jax.random.uniform(ks[2], (4 * H,), jnp.float32, -bound, bound)
    b_hh = jax.random.uniform(ks[3], (4 * H,), jnp.float32, -bound, bound)
    w_lin = jax.random.uniform(ks[4], (C, H), jnp.float32, -bound, bound)
    b_lin = jax.random.uniform(ks[5], (C,), jnp.float32, -bound, bound)
    params = (w_ih, w_hh, b_ih, b_hh, w_lin, b_lin)

    input_seq = jax.random.normal(ks[6], (B, T, D), jnp.float32)
    hidden = (jnp.zeros((1, B, H), jnp.float32), jnp.zeros((1, B, H), jnp.float32))

    pred_ref, (h_ref, c_ref) = lstm_forward_ref(input_seq, hidden, params)

    # f32 matmul path: must match the f32 reference tightly.
    pred, (h_n, c_n) = lstm_forward(input_seq, hidden, params,
                                    batch_size=B, use_bf16=False)
    jax.block_until_ready((pred, h_n, c_n))
    assert pred.shape == (B,)
    assert h_n.shape == (1, B, H) and c_n.shape == (1, B, H)
    assert jnp.allclose(pred, pred_ref, rtol=1e-4, atol=1e-4)
    assert jnp.allclose(h_n, h_ref, rtol=1e-4, atol=1e-4)
    assert jnp.allclose(c_n, c_ref, rtol=1e-4, atol=1e-4)

    # bf16 MXU-operand path (v6e/v7x fast path): f32 state, looser tolerance.
    pred_b, (h_b, c_b) = lstm_forward(input_seq, hidden, params,
                                      batch_size=B, use_bf16=True)
    jax.block_until_ready((pred_b, h_b, c_b))
    assert jnp.allclose(pred_b, pred_ref, rtol=3e-2, atol=3e-2)
    assert jnp.allclose(h_b, h_ref, rtol=3e-2, atol=3e-2)
    assert jnp.allclose(c_b, c_ref, rtol=3e-2, atol=3e-2)

    print("KERNEL_OK")
</pallas_src>

<mosaic_0001>
module attributes {stable_mosaic.version = 11 : i64} {
  func.func @_lstm_kernel(%arg0: i32, %arg1: memref<64x128xf32, #tpu.memory_space<vmem>>, %arg2: memref<8x128xf32, #tpu.memory_space<vmem>>, %arg3: memref<8x128xf32, #tpu.memory_space<vmem>>, %arg4: memref<128x512xf32, #tpu.memory_space<vmem>>, %arg5: memref<128x512xf32, #tpu.memory_space<vmem>>, %arg6: memref<1x512xf32, #tpu.memory_space<vmem>>, %arg7: memref<8x128xf32, #tpu.memory_space<vmem>>, %arg8: memref<8x128xf32, #tpu.memory_space<vmem>>, %arg9: memref<64x512xf32, #tpu.memory_space<vmem>>) attributes {dimension_semantics = [#tpu.dimension_semantics<arbitrary>], iteration_bounds = array<i64: 1>, scalar_prefetch = 0 : i64, scratch_operands = 1 : i64, tpu.core_type = #tpu.core_type<tc>, window_params = [{transform_indices = @transform_0, window_bounds = array<i64: 64, 128>}, {pipeline_mode = #tpu.pipeline_mode<synchronous>, transform_indices = @transform_1, window_bounds = array<i64: 8, 128>}, {pipeline_mode = #tpu.pipeline_mode<synchronous>, transform_indices = @transform_2, window_bounds = array<i64: 8, 128>}, {pipeline_mode = #tpu.pipeline_mode<synchronous>, transform_indices = @transform_3, window_bounds = array<i64: 128, 512>}, {pipeline_mode = #tpu.pipeline_mode<synchronous>, transform_indices = @transform_4, window_bounds = array<i64: 128, 512>}, {pipeline_mode = #tpu.pipeline_mode<synchronous>, transform_indices = @transform_5, window_bounds = array<i64: 1, 512>}, {pipeline_mode = #tpu.pipeline_mode<synchronous>, transform_indices = @transform_6, window_bounds = array<i64: 8, 128>}, {pipeline_mode = #tpu.pipeline_mode<synchronous>, transform_indices = @transform_7, window_bounds = array<i64: 8, 128>}]} {
    %c0_i32 = arith.constant 0 : i32
    %0 = arith.cmpi eq, %arg0, %c0_i32 : i32
    %1 = arith.extui %0 : i1 to i32
    %c0_i32_0 = arith.constant 0 : i32
    %2 = arith.cmpi ne, %1, %c0_i32_0 : i32
    scf.if %2 {
      %c0_81 = arith.constant 0 : index
      %c0_82 = arith.constant 0 : index
      %270 = vector.load %arg2[%c0_81, %c0_82] : memref<8x128xf32, #tpu.memory_space<vmem>>, vector<8x128xf32>
      %c0_83 = arith.constant 0 : index
      %c0_84 = arith.constant 0 : index
      %271 = vector.load %arg7[%c0_83, %c0_84] : memref<8x128xf32, #tpu.memory_space<vmem>>, vector<8x128xf32>
      tpu.vector_store %arg7[%c0_83, %c0_84], %270 {strides = array<i32>} : memref<8x128xf32, #tpu.memory_space<vmem>>, vector<8x128xf32>,
      %c0_85 = arith.constant 0 : index
      %c0_86 = arith.constant 0 : index
      %272 = vector.load %arg3[%c0_85, %c0_86] : memref<8x128xf32, #tpu.memory_space<vmem>>, vector<8x128xf32>
      %c0_87 = arith.constant 0 : index
      %c0_88 = arith.constant 0 : index
      %273 = vector.load %arg8[%c0_87, %c0_88] : memref<8x128xf32, #tpu.memory_space<vmem>>, vector<8x128xf32>
      tpu.vector_store %arg8[%c0_87, %c0_88], %272 {strides = array<i32>} : memref<8x128xf32, #tpu.memory_space<vmem>>, vector<8x128xf32>,
    } else {
    }
    %c0 = arith.constant 0 : index
    %c0_1 = arith.constant 0 : index
    %3 = vector.load %arg1[%c0, %c0_1] : memref<64x128xf32, #tpu.memory_space<vmem>>, vector<64x128xf32>
    %c0_2 = arith.constant 0 : index
    %c0_3 = arith.constant 0 : index
    %4 = vector.load %arg4[%c0_2, %c0_3] : memref<128x512xf32, #tpu.memory_space<vmem>>, vector<128x512xf32>
    %cst = arith.constant dense<0.000000e+00> : vector<64x512xf32>
    %5 = tpu.matmul %3, %4, %cst {dimension_numbers = #tpu.dot_dimension_numbers<[1], [0], [0], [1], [0, 0, 1, 1], [], []>} : vector<64x128xf32>, vector<128x512xf32>, vector<64x512xf32> -> vector<64x512xf32>
    %c0_4 = arith.constant 0 : index
    %c0_5 = arith.constant 0 : index
    %6 = vector.load %arg6[%c0_4, %c0_5] : memref<1x512xf32, #tpu.memory_space<vmem>>, vector<1x512xf32>
    %7 = vector.broadcast %6 : vector<1x512xf32> to vector<64x512xf32>
    %8 = arith.addf %5, %7 : vector<64x512xf32>
    %c0_6 = arith.constant 0 : index
    %c0_7 = arith.constant 0 : index
    %9 = vector.load %arg9[%c0_6, %c0_7] : memref<64x512xf32, #tpu.memory_space<vmem>>, vector<64x512xf32>
    tpu.vector_store %arg9[%c0_6, %c0_7], %8 {strides = array<i32>} : memref<64x512xf32, #tpu.memory_space<vmem>>, vector<64x512xf32>,
    %c0_8 = arith.constant 0 : index
    %c0_9 = arith.constant 0 : index
    %10 = vector.load %arg7[%c0_8, %c0_9] : memref<8x128xf32, #tpu.memory_space<vmem>>, vector<8x128xf32>
    %c0_10 = arith.constant 0 : index
    %c0_11 = arith.constant 0 : index
    %11 = vector.load %arg8[%c0_10, %c0_11] : memref<8x128xf32, #tpu.memory_space<vmem>>, vector<8x128xf32>
    %c0_i32_12 = arith.constant 0 : i32
    %c8_i32 = arith.constant 8 : i32
    %12 = arith.muli %c0_i32_12, %c8_i32 : i32
    %13 = tpu.assume_multiple %12, 8 : i32
    %14 = arith.index_cast %13 : i32 to index
    %c0_13 = arith.constant 0 : index
    %15 = vector.load %arg9[%14, %c0_13] : memref<64x512xf32, #tpu.memory_space<vmem>>, vector<8x512xf32>
    %c0_14 = arith.constant 0 : index
    %c0_15 = arith.constant 0 : index
    %16 = vector.load %arg5[%c0_14, %c0_15] : memref<128x512xf32, #tpu.memory_space<vmem>>, vector<128x512xf32>
    %cst_16 = arith.constant dense<0.000000e+00> : vector<8x512xf32>
    %17 = tpu.matmul %10, %16, %cst_16 {dimension_numbers = #tpu.dot_dimension_numbers<[1], [0], [0], [1], [0, 0, 1, 1], [], []>} : vector<8x128xf32>, vector<128x512xf32>, vector<8x512xf32> -> vector<8x512xf32>
    %18 = arith.addf %15, %17 : vector<8x512xf32>
    %19 = vector.extract_strided_slice %18 {offsets = [0, 0], sizes = [8, 128], strides = [1, 1]} : vector<8x512xf32> to vector<8x128xf32>
    %20 = arith.negf %19 : vector<8x128xf32>
    %21 = math.exp %20 : vector<8x128xf32>
    %cst_17 = arith.constant 1.000000e+00 : f32
    %22 = vector.broadcast %cst_17 : f32 to vector<8x128xf32>
    %23 = arith.addf %22, %21 : vector<8x128xf32>
    %24 = arith.divf %22, %23 : vector<8x128xf32>
    %25 = vector.extract_strided_slice %18 {offsets = [0, 128], sizes = [8, 128], strides = [1, 1]} : vector<8x512xf32> to vector<8x128xf32>
    %26 = arith.negf %25 : vector<8x128xf32>
    %27 = math.exp %26 : vector<8x128xf32>
    %cst_18 = arith.constant 1.000000e+00 : f32
    %28 = vector.broadcast %cst_18 : f32 to vector<8x128xf32>
    %29 = arith.addf %28, %27 : vector<8x128xf32>
    %30 = arith.divf %28, %29 : vector<8x128xf32>
    %31 = vector.extract_strided_slice %18 {offsets = [0, 256], sizes = [8, 128], strides = [1, 1]} : vector<8x512xf32> to vector<8x128xf32>
    %32 = math.tanh %31 : vector<8x128xf32>
    %33 = vector.extract_strided_slice %18 {offsets = [0, 384], sizes = [8, 128], strides = [1, 1]} : vector<8x512xf32> to vector<8x128xf32>
    %34 = arith.negf %33 : vector<8x128xf32>
    %35 = math.exp %34 : vector<8x128xf32>
    %cst_19 = arith.constant 1.000000e+00 : f32
    %36 = vector.broadcast %cst_19 : f32 to vector<8x128xf32>
    %37 = arith.addf %36, %35 : vector<8x128xf32>
    %38 = arith.divf %36, %37 : vector<8x128xf32>
    %39 = arith.mulf %30, %11 : vector<8x128xf32>
    %40 = arith.mulf %24, %32 : vector<8x128xf32>
    %41 = arith.addf %39, %40 : vector<8x128xf32>
    %42 = math.tanh %41 : vector<8x128xf32>
    %43 = arith.mulf %38, %42 : vector<8x128xf32>
    %c1_i32 = arith.constant 1 : i32
    %c8_i32_20 = arith.constant 8 : i32
    %44 = arith.muli %c1_i32, %c8_i32_20 : i32
    %45 = tpu.assume_multiple %44, 8 : i32
    %46 = arith.index_cast %45 : i32 to index
    %c0_21 = arith.constant 0 : index
    %47 = vector.load %arg9[%46, %c0_21] : memref<64x512xf32, #tpu.memory_space<vmem>>, vector<8x512xf32>
    %c0_22 = arith.constant 0 : index
    %c0_23 = arith.constant 0 : index
    %48 = vector.load %arg5[%c0_22, %c0_23] : memref<128x512xf32, #tpu.memory_space<vmem>>, vector<128x512xf32>
    %cst_24 = arith.constant dense<0.000000e+00> : vector<8x512xf32>
    %49 = tpu.matmul %43, %48, %cst_24 {dimension_numbers = #tpu.dot_dimension_numbers<[1], [0], [0], [1], [0, 0, 1, 1], [], []>} : vector<8x128xf32>, vector<128x512xf32>, vector<8x512xf32> -> vector<8x512xf32>
    %50 = arith.addf %47, %49 : vector<8x512xf32>
    %51 = vector.extract_strided_slice %50 {offsets = [0, 0], sizes = [8, 128], strides = [1, 1]} : vector<8x512xf32> to vector<8x128xf32>
    %52 = arith.negf %51 : vector<8x128xf32>
    %53 = math.exp %52 : vector<8x128xf32>
    %cst_25 = arith.constant 1.000000e+00 : f32
    %54 = vector.broadcast %cst_25 : f32 to vector<8x128xf32>
    %55 = arith.addf %54, %53 : vector<8x128xf32>
    %56 = arith.divf %54, %55 : vector<8x128xf32>
    %57 = vector.extract_strided_slice %50 {offsets = [0, 128], sizes = [8, 128], strides = [1, 1]} : vector<8x512xf32> to vector<8x128xf32>
    %58 = arith.negf %57 : vector<8x128xf32>
    %59 = math.exp %58 : vector<8x128xf32>
    %cst_26 = arith.constant 1.000000e+00 : f32
    %60 = vector.broadcast %cst_26 : f32 to vector<8x128xf32>
    %61 = arith.addf %60, %59 : vector<8x128xf32>
    %62 = arith.divf %60, %61 : vector<8x128xf32>
    %63 = vector.extract_strided_slice %50 {offsets = [0, 256], sizes = [8, 128], strides = [1, 1]} : vector<8x512xf32> to vector<8x128xf32>
    %64 = math.tanh %63 : vector<8x128xf32>
    %65 = vector.extract_strided_slice %50 {offsets = [0, 384], sizes = [8, 128], strides = [1, 1]} : vector<8x512xf32> to vector<8x128xf32>
    %66 = arith.negf %65 : vector<8x128xf32>
    %67 = math.exp %66 : vector<8x128xf32>
    %cst_27 = arith.constant 1.000000e+00 : f32
    %68 = vector.broadcast %cst_27 : f32 to vector<8x128xf32>
    %69 = arith.addf %68, %67 : vector<8x128xf32>
    %70 = arith.divf %68, %69 : vector<8x128xf32>
    %71 = arith.mulf %62, %41 : vector<8x128xf32>
    %72 = arith.mulf %56, %64 : vector<8x128xf32>
    %73 = arith.addf %71, %72 : vector<8x128xf32>
    %74 = math.tanh %73 : vector<8x128xf32>
    %75 = arith.mulf %70, %74 : vector<8x128xf32>
    %c2_i32 = arith.constant 2 : i32
    %c8_i32_28 = arith.constant 8 : i32
    %76 = arith.muli %c2_i32, %c8_i32_28 : i32
    %77 = tpu.assume_multiple %76, 8 : i32
    %78 = arith.index_cast %77 : i32 to index
    %c0_29 = arith.constant 0 : index
    %79 = vector.load %arg9[%78, %c0_29] : memref<64x512xf32, #tpu.memory_space<vmem>>, vector<8x512xf32>
    %c0_30 = arith.constant 0 : index
    %c0_31 = arith.constant 0 : index
    %80 = vector.load %arg5[%c0_30, %c0_31] : memref<128x512xf32, #tpu.memory_space<vmem>>, vector<128x512xf32>
    %cst_32 = arith.constant dense<0.000000e+00> : vector<8x512xf32>
    %81 = tpu.matmul %75, %80, %cst_32 {dimension_numbers = #tpu.dot_dimension_numbers<[1], [0], [0], [1], [0, 0, 1, 1], [], []>} : vector<8x128xf32>, vector<128x512xf32>, vector<8x512xf32> -> vector<8x512xf32>
    %82 = arith.addf %79, %81 : vector<8x512xf32>
    %83 = vector.extract_strided_slice %82 {offsets = [0, 0], sizes = [8, 128], strides = [1, 1]} : vector<8x512xf32> to vector<8x128xf32>
    %84 = arith.negf %83 : vector<8x128xf32>
    %85 = math.exp %84 : vector<8x128xf32>
    %cst_33 = arith.constant 1.000000e+00 : f32
    %86 = vector.broadcast %cst_33 : f32 to vector<8x128xf32>
    %87 = arith.addf %86, %85 : vector<8x128xf32>
    %88 = arith.divf %86, %87 : vector<8x128xf32>
    %89 = vector.extract_strided_slice %82 {offsets = [0, 128], sizes = [8, 128], strides = [1, 1]} : vector<8x512xf32> to vector<8x128xf32>
    %90 = arith.negf %89 : vector<8x128xf32>
    %91 = math.exp %90 : vector<8x128xf32>
    %cst_34 = arith.constant 1.000000e+00 : f32
    %92 = vector.broadcast %cst_34 : f32 to vector<8x128xf32>
    %93 = arith.addf %92, %91 : vector<8x128xf32>
    %94 = arith.divf %92, %93 : vector<8x128xf32>
    %95 = vector.extract_strided_slice %82 {offsets = [0, 256], sizes = [8, 128], strides = [1, 1]} : vector<8x512xf32> to vector<8x128xf32>
    %96 = math.tanh %95 : vector<8x128xf32>
    %97 = vector.extract_strided_slice %82 {offsets = [0, 384], sizes = [8, 128], strides = [1, 1]} : vector<8x512xf32> to vector<8x128xf32>
    %98 = arith.negf %97 : vector<8x128xf32>
    %99 = math.exp %98 : vector<8x128xf32>
    %cst_35 = arith.constant 1.000000e+00 : f32
    %100 = vector.broadcast %cst_35 : f32 to vector<8x128xf32>
    %101 = arith.addf %100, %99 : vector<8x128xf32>
    %102 = arith.divf %100, %101 : vector<8x128xf32>
    %103 = arith.mulf %94, %73 : vector<8x128xf32>
    %104 = arith.mulf %88, %96 : vector<8x128xf32>
    %105 = arith.addf %103, %104 : vector<8x128xf32>
    %106 = math.tanh %105 : vector<8x128xf32>
    %107 = arith.mulf %102, %106 : vector<8x128xf32>
    %c3_i32 = arith.constant 3 : i32
    %c8_i32_36 = arith.constant 8 : i32
    %108 = arith.muli %c3_i32, %c8_i32_36 : i32
    %109 = tpu.assume_multiple %108, 8 : i32
    %110 = arith.index_cast %109 : i32 to index
    %c0_37 = arith.constant 0 : index
    %111 = vector.load %arg9[%110, %c0_37] : memref<64x512xf32, #tpu.memory_space<vmem>>, vector<8x512xf32>
    %c0_38 = arith.constant 0 : index
    %c0_39 = arith.constant 0 : index
    %112 = vector.load %arg5[%c0_38, %c0_39] : memref<128x512xf32, #tpu.memory_space<vmem>>, vector<128x512xf32>
    %cst_40 = arith.constant dense<0.000000e+00> : vector<8x512xf32>
    %113 = tpu.matmul %107, %112, %cst_40 {dimension_numbers = #tpu.dot_dimension_numbers<[1], [0], [0], [1], [0, 0, 1, 1], [], []>} : vector<8x128xf32>, vector<128x512xf32>, vector<8x512xf32> -> vector<8x512xf32>
    %114 = arith.addf %111, %113 : vector<8x512xf32>
    %115 = vector.extract_strided_slice %114 {offsets = [0, 0], sizes = [8, 128], strides = [1, 1]} : vector<8x512xf32> to vector<8x128xf32>
    %116 = arith.negf %115 : vector<8x128xf32>
    %117 = math.exp %116 : vector<8x128xf32>
    %cst_41 = arith.constant 1.000000e+00 : f32
    %118 = vector.broadcast %cst_41 : f32 to vector<8x128xf32>
    %119 = arith.addf %118, %117 : vector<8x128xf32>
    %120 = arith.divf %118, %119 : vector<8x128xf32>
    %121 = vector.extract_strided_slice %114 {offsets = [0, 128], sizes = [8, 128], strides = [1, 1]} : vector<8x512xf32> to vector<8x128xf32>
    %122 = arith.negf %121 : vector<8x128xf32>
    %123 = math.exp %122 : vector<8x128xf32>
    %cst_42 = arith.constant 1.000000e+00 : f32
    %124 = vector.broadcast %cst_42 : f32 to vector<8x128xf32>
    %125 = arith.addf %124, %123 : vector<8x128xf32>
    %126 = arith.divf %124, %125 : vector<8x128xf32>
    %127 = vector.extract_strided_slice %114 {offsets = [0, 256], sizes = [8, 128], strides = [1, 1]} : vector<8x512xf32> to vector<8x128xf32>
    %128 = math.tanh %127 : vector<8x128xf32>
    %129 = vector.extract_strided_slice %114 {offsets = [0, 384], sizes = [8, 128], strides = [1, 1]} : vector<8x512xf32> to vector<8x128xf32>
    %130 = arith.negf %129 : vector<8x128xf32>
    %131 = math.exp %130 : vector<8x128xf32>
    %cst_43 = arith.constant 1.000000e+00 : f32
    %132 = vector.broadcast %cst_43 : f32 to vector<8x128xf32>
    %133 = arith.addf %132, %131 : vector<8x128xf32>
    %134 = arith.divf %132, %133 : vector<8x128xf32>
    %135 = arith.mulf %126, %105 : vector<8x128xf32>
    %136 = arith.mulf %120, %128 : vector<8x128xf32>
    %137 = arith.addf %135, %136 : vector<8x128xf32>
    %138 = math.tanh %137 : vector<8x128xf32>
    %139 = arith.mulf %134, %138 : vector<8x128xf32>
    %c4_i32 = arith.constant 4 : i32
    %c8_i32_44 = arith.constant 8 : i32
    %140 = arith.muli %c4_i32, %c8_i32_44 : i32
    %141 = tpu.assume_multiple %140, 8 : i32
    %142 = arith.index_cast %141 : i32 to index
    %c0_45 = arith.constant 0 : index
    %143 = vector.load %arg9[%142, %c0_45] : memref<64x512xf32, #tpu.memory_space<vmem>>, vector<8x512xf32>
    %c0_46 = arith.constant 0 : index
    %c0_47 = arith.constant 0 : index
    %144 = vector.load %arg5[%c0_46, %c0_47] : memref<128x512xf32, #tpu.memory_space<vmem>>, vector<128x512xf32>
    %cst_48 = arith.constant dense<0.000000e+00> : vector<8x512xf32>
    %145 = tpu.matmul %139, %144, %cst_48 {dimension_numbers = #tpu.dot_dimension_numbers<[1], [0], [0], [1], [0, 0, 1, 1], [], []>} : vector<8x128xf32>, vector<128x512xf32>, vector<8x512xf32> -> vector<8x512xf32>
    %146 = arith.addf %143, %145 : vector<8x512xf32>
    %147 = vector.extract_strided_slice %146 {offsets = [0, 0], sizes = [8, 128], strides = [1, 1]} : vector<8x512xf32> to vector<8x128xf32>
    %148 = arith.negf %147 : vector<8x128xf32>
    %149 = math.exp %148 : vector<8x128xf32>
    %cst_49 = arith.constant 1.000000e+00 : f32
    %150 = vector.broadcast %cst_49 : f32 to vector<8x128xf32>
    %151 = arith.addf %150, %149 : vector<8x128xf32>
    %152 = arith.divf %150, %151 : vector<8x128xf32>
    %153 = vector.extract_strided_slice %146 {offsets = [0, 128], sizes = [8, 128], strides = [1, 1]} : vector<8x512xf32> to vector<8x128xf32>
    %154 = arith.negf %153 : vector<8x128xf32>
    %155 = math.exp %154 : vector<8x128xf32>
    %cst_50 = arith.constant 1.000000e+00 : f32
    %156 = vector.broadcast %cst_50 : f32 to vector<8x128xf32>
    %157 = arith.addf %156, %155 : vector<8x128xf32>
    %158 = arith.divf %156, %157 : vector<8x128xf32>
    %159 = vector.extract_strided_slice %146 {offsets = [0, 256], sizes = [8, 128], strides = [1, 1]} : vector<8x512xf32> to vector<8x128xf32>
    %160 = math.tanh %159 : vector<8x128xf32>
    %161 = vector.extract_strided_slice %146 {offsets = [0, 384], sizes = [8, 128], strides = [1, 1]} : vector<8x512xf32> to vector<8x128xf32>
    %162 = arith.negf %161 : vector<8x128xf32>
    %163 = math.exp %162 : vector<8x128xf32>
    %cst_51 = arith.constant 1.000000e+00 : f32
    %164 = vector.broadcast %cst_51 : f32 to vector<8x128xf32>
    %165 = arith.addf %164, %163 : vector<8x128xf32>
    %166 = arith.divf %164, %165 : vector<8x128xf32>
    %167 = arith.mulf %158, %137 : vector<8x128xf32>
    %168 = arith.mulf %152, %160 : vector<8x128xf32>
    %169 = arith.addf %167, %168 : vector<8x128xf32>
    %170 = math.tanh %169 : vector<8x128xf32>
    %171 = arith.mulf %166, %170 : vector<8x128xf32>
    %c5_i32 = arith.constant 5 : i32
    %c8_i32_52 = arith.constant 8 : i32
    %172 = arith.muli %c5_i32, %c8_i32_52 : i32
    %173 = tpu.assume_multiple %172, 8 : i32
    %174 = arith.index_cast %173 : i32 to index
    %c0_53 = arith.constant 0 : index
    %175 = vector.load %arg9[%174, %c0_53] : memref<64x512xf32, #tpu.memory_space<vmem>>, vector<8x512xf32>
    %c0_54 = arith.constant 0 : index
    %c0_55 = arith.constant 0 : index
    %176 = vector.load %arg5[%c0_54, %c0_55] : memref<128x512xf32, #tpu.memory_space<vmem>>, vector<128x512xf32>
    %cst_56 = arith.constant dense<0.000000e+00> : vector<8x512xf32>
    %177 = tpu.matmul %171, %176, %cst_56 {dimension_numbers = #tpu.dot_dimension_numbers<[1], [0], [0], [1], [0, 0, 1, 1], [], []>} : vector<8x128xf32>, vector<128x512xf32>, vector<8x512xf32> -> vector<8x512xf32>
    %178 = arith.addf %175, %177 : vector<8x512xf32>
    %179 = vector.extract_strided_slice %178 {offsets = [0, 0], sizes = [8, 128], strides = [1, 1]} : vector<8x512xf32> to vector<8x128xf32>
    %180 = arith.negf %179 : vector<8x128xf32>
    %181 = math.exp %180 : vector<8x128xf32>
    %cst_57 = arith.constant 1.000000e+00 : f32
    %182 = vector.broadcast %cst_57 : f32 to vector<8x128xf32>
    %183 = arith.addf %182, %181 : vector<8x128xf32>
    %184 = arith.divf %182, %183 : vector<8x128xf32>
    %185 = vector.extract_strided_slice %178 {offsets = [0, 128], sizes = [8, 128], strides = [1, 1]} : vector<8x512xf32> to vector<8x128xf32>
    %186 = arith.negf %185 : vector<8x128xf32>
    %187 = math.exp %186 : vector<8x128xf32>
    %cst_58 = arith.constant 1.000000e+00 : f32
    %188 = vector.broadcast %cst_58 : f32 to vector<8x128xf32>
    %189 = arith.addf %188, %187 : vector<8x128xf32>
    %190 = arith.divf %188, %189 : vector<8x128xf32>
    %191 = vector.extract_strided_slice %178 {offsets = [0, 256], sizes = [8, 128], strides = [1, 1]} : vector<8x512xf32> to vector<8x128xf32>
    %192 = math.tanh %191 : vector<8x128xf32>
    %193 = vector.extract_strided_slice %178 {offsets = [0, 384], sizes = [8, 128], strides = [1, 1]} : vector<8x512xf32> to vector<8x128xf32>
    %194 = arith.negf %193 : vector<8x128xf32>
    %195 = math.exp %194 : vector<8x128xf32>
    %cst_59 = arith.constant 1.000000e+00 : f32
    %196 = vector.broadcast %cst_59 : f32 to vector<8x128xf32>
    %197 = arith.addf %196, %195 : vector<8x128xf32>
    %198 = arith.divf %196, %197 : vector<8x128xf32>
    %199 = arith.mulf %190, %169 : vector<8x128xf32>
    %200 = arith.mulf %184, %192 : vector<8x128xf32>
    %201 = arith.addf %199, %200 : vector<8x128xf32>
    %202 = math.tanh %201 : vector<8x128xf32>
    %203 = arith.mulf %198, %202 : vector<8x128xf32>
    %c6_i32 = arith.constant 6 : i32
    %c8_i32_60 = arith.constant 8 : i32
    %204 = arith.muli %c6_i32, %c8_i32_60 : i32
    %205 = tpu.assume_multiple %204, 8 : i32
    %206 = arith.index_cast %205 : i32 to index
    %c0_61 = arith.constant 0 : index
    %207 = vector.load %arg9[%206, %c0_61] : memref<64x512xf32, #tpu.memory_space<vmem>>, vector<8x512xf32>
    %c0_62 = arith.constant 0 : index
    %c0_63 = arith.constant 0 : index
    %208 = vector.load %arg5[%c0_62, %c0_63] : memref<128x512xf32, #tpu.memory_space<vmem>>, vector<128x512xf32>
    %cst_64 = arith.constant dense<0.000000e+00> : vector<8x512xf32>
    %209 = tpu.matmul %203, %208, %cst_64 {dimension_numbers = #tpu.dot_dimension_numbers<[1], [0], [0], [1], [0, 0, 1, 1], [], []>} : vector<8x128xf32>, vector<128x512xf32>, vector<8x512xf32> -> vector<8x512xf32>
    %210 = arith.addf %207, %209 : vector<8x512xf32>
    %211 = vector.extract_strided_slice %210 {offsets = [0, 0], sizes = [8, 128], strides = [1, 1]} : vector<8x512xf32> to vector<8x128xf32>
    %212 = arith.negf %211 : vector<8x128xf32>
    %213 = math.exp %212 : vector<8x128xf32>
    %cst_65 = arith.constant 1.000000e+00 : f32
    %214 = vector.broadcast %cst_65 : f32 to vector<8x128xf32>
    %215 = arith.addf %214, %213 : vector<8x128xf32>
    %216 = arith.divf %214, %215 : vector<8x128xf32>
    %217 = vector.extract_strided_slice %210 {offsets = [0, 128], sizes = [8, 128], strides = [1, 1]} : vector<8x512xf32> to vector<8x128xf32>
    %218 = arith.negf %217 : vector<8x128xf32>
    %219 = math.exp %218 : vector<8x128xf32>
    %cst_66 = arith.constant 1.000000e+00 : f32
    %220 = vector.broadcast %cst_66 : f32 to vector<8x128xf32>
    %221 = arith.addf %220, %219 : vector<8x128xf32>
    %222 = arith.divf %220, %221 : vector<8x128xf32>
    %223 = vector.extract_strided_slice %210 {offsets = [0, 256], sizes = [8, 128], strides = [1, 1]} : vector<8x512xf32> to vector<8x128xf32>
    %224 = math.tanh %223 : vector<8x128xf32>
    %225 = vector.extract_strided_slice %210 {offsets = [0, 384], sizes = [8, 128], strides = [1, 1]} : vector<8x512xf32> to vector<8x128xf32>
    %226 = arith.negf %225 : vector<8x128xf32>
    %227 = math.exp %226 : vector<8x128xf32>
    %cst_67 = arith.constant 1.000000e+00 : f32
    %228 = vector.broadcast %cst_67 : f32 to vector<8x128xf32>
    %229 = arith.addf %228, %227 : vector<8x128xf32>
    %230 = arith.divf %228, %229 : vector<8x128xf32>
    %231 = arith.mulf %222, %201 : vector<8x128xf32>
    %232 = arith.mulf %216, %224 : vector<8x128xf32>
    %233 = arith.addf %231, %232 : vector<8x128xf32>
    %234 = math.tanh %233 : vector<8x128xf32>
    %235 = arith.mulf %230, %234 : vector<8x128xf32>
    %c7_i32 = arith.constant 7 : i32
    %c8_i32_68 = arith.constant 8 : i32
    %236 = arith.muli %c7_i32, %c8_i32_68 : i32
    %237 = tpu.assume_multiple %236, 8 : i32
    %238 = arith.index_cast %237 : i32 to index
    %c0_69 = arith.constant 0 : index
    %239 = vector.load %arg9[%238, %c0_69] : memref<64x512xf32, #tpu.memory_space<vmem>>, vector<8x512xf32>
    %c0_70 = arith.constant 0 : index
    %c0_71 = arith.constant 0 : index
    %240 = vector.load %arg5[%c0_70, %c0_71] : memref<128x512xf32, #tpu.memory_space<vmem>>, vector<128x512xf32>
    %cst_72 = arith.constant dense<0.000000e+00> : vector<8x512xf32>
    %241 = tpu.matmul %235, %240, %cst_72 {dimension_numbers = #tpu.dot_dimension_numbers<[1], [0], [0], [1], [0, 0, 1, 1], [], []>} : vector<8x128xf32>, vector<128x512xf32>, vector<8x512xf32> -> vector<8x512xf32>
    %242 = arith.addf %239, %241 : vector<8x512xf32>
    %243 = vector.extract_strided_slice %242 {offsets = [0, 0], sizes = [8, 128], strides = [1, 1]} : vector<8x512xf32> to vector<8x128xf32>
    %244 = arith.negf %243 : vector<8x128xf32>
    %245 = math.exp %244 : vector<8x128xf32>
    %cst_73 = arith.constant 1.000000e+00 : f32
    %246 = vector.broadcast %cst_73 : f32 to vector<8x128xf32>
    %247 = arith.addf %246, %245 : vector<8x128xf32>
    %248 = arith.divf %246, %247 : vector<8x128xf32>
    %249 = vector.extract_strided_slice %242 {offsets = [0, 128], sizes = [8, 128], strides = [1, 1]} : vector<8x512xf32> to vector<8x128xf32>
    %250 = arith.negf %249 : vector<8x128xf32>
    %251 = math.exp %250 : vector<8x128xf32>
    %cst_74 = arith.constant 1.000000e+00 : f32
    %252 = vector.broadcast %cst_74 : f32 to vector<8x128xf32>
    %253 = arith.addf %252, %251 : vector<8x128xf32>
    %254 = arith.divf %252, %253 : vector<8x128xf32>
    %255 = vector.extract_strided_slice %242 {offsets = [0, 256], sizes = [8, 128], strides = [1, 1]} : vector<8x512xf32> to vector<8x128xf32>
    %256 = math.tanh %255 : vector<8x128xf32>
    %257 = vector.extract_strided_slice %242 {offsets = [0, 384], sizes = [8, 128], strides = [1, 1]} : vector<8x512xf32> to vector<8x128xf32>
    %258 = arith.negf %257 : vector<8x128xf32>
    %259 = math.exp %258 : vector<8x128xf32>
    %cst_75 = arith.constant 1.000000e+00 : f32
    %260 = vector.broadcast %cst_75 : f32 to vector<8x128xf32>
    %261 = arith.addf %260, %259 : vector<8x128xf32>
    %262 = arith.divf %260, %261 : vector<8x128xf32>
    %263 = arith.mulf %254, %233 : vector<8x128xf32>
    %264 = arith.mulf %248, %256 : vector<8x128xf32>
    %265 = arith.addf %263, %264 : vector<8x128xf32>
    %266 = math.tanh %265 : vector<8x128xf32>
    %267 = arith.mulf %262, %266 : vector<8x128xf32>
    %c8_i32_76 = arith.constant 8 : i32
    %c0_77 = arith.constant 0 : index
    %c0_78 = arith.constant 0 : index
    %268 = vector.load %arg7[%c0_77, %c0_78] : memref<8x128xf32, #tpu.memory_space<vmem>>, vector<8x128xf32>
    tpu.vector_store %arg7[%c0_77, %c0_78], %267 {strides = array<i32>} : memref<8x128xf32, #tpu.memory_space<vmem>>, vector<8x128xf32>,
    %c0_79 = arith.constant 0 : index
    %c0_80 = arith.constant 0 : index
    %269 = vector.load %arg8[%c0_79, %c0_80] : memref<8x128xf32, #tpu.memory_space<vmem>>, vector<8x128xf32>
    tpu.vector_store %arg8[%c0_79, %c0_80], %265 {strides = array<i32>} : memref<8x128xf32, #tpu.memory_space<vmem>>, vector<8x128xf32>,
    return
  }
  func.func @transform_0(%arg0: i32) -> (i32, i32) {
    %c0_i32 = arith.constant 0 : i32
    %c0_i32_0 = arith.constant 0 : i32
    return %arg0, %c0_i32 : i32, i32
  }
  func.func @transform_1(%arg0: i32) -> (i32, i32) {
    %c0_i32 = arith.constant 0 : i32
    %c0_i32_0 = arith.constant 0 : i32
    %c0_i32_1 = arith.constant 0 : i32
    return %c0_i32, %c0_i32_0 : i32, i32
  }
  func.func @transform_2(%arg0: i32) -> (i32, i32) {
    %c0_i32 = arith.constant 0 : i32
    %c0_i32_0 = arith.constant 0 : i32
    %c0_i32_1 = arith.constant 0 : i32
    return %c0_i32, %c0_i32_0 : i32, i32
  }
  func.func @transform_3(%arg0: i32) -> (i32, i32) {
    %c0_i32 = arith.constant 0 : i32
    %c0_i32_0 = arith.constant 0 : i32
    %c0_i32_1 = arith.constant 0 : i32
    return %c0_i32, %c0_i32_0 : i32, i32
  }
  func.func @transform_4(%arg0: i32) -> (i32, i32) {
    %c0_i32 = arith.constant 0 : i32
    %c0_i32_0 = arith.constant 0 : i32
    %c0_i32_1 = arith.constant 0 : i32
    return %c0_i32, %c0_i32_0 : i32, i32
  }
  func.func @transform_5(%arg0: i32) -> (i32, i32) {
    %c0_i32 = arith.constant 0 : i32
    %c0_i32_0 = arith.constant 0 : i32
    %c0_i32_1 = arith.constant 0 : i32
    return %c0_i32, %c0_i32_0 : i32, i32
  }
  func.func @transform_6(%arg0: i32) -> (i32, i32) {
    %c0_i32 = arith.constant 0 : i32
    %c0_i32_0 = arith.constant 0 : i32
    %c0_i32_1 = arith.constant 0 : i32
    return %c0_i32, %c0_i32_0 : i32, i32
  }
  func.func @transform_7(%arg0: i32) -> (i32, i32) {
    %c0_i32 = arith.constant 0 : i32
    %c0_i32_0 = arith.constant 0 : i32
    %c0_i32_1 = arith.constant 0 : i32
    return %c0_i32, %c0_i32_0 : i32, i32
  }
}

</mosaic_0001>

<llo_original>
// kernel: lstm_forward.1
$region0: #{lstm_forward.1}
  #allocation0 [shape = 'u32[]', space=smem, size = 0x4, offset = 0x4, fixed_abs, tag = 'smem constant byte address 0x4 - core index']
  #allocation1 [shape = 'u32[144,128]{1,0:T(1,128)}', space=vmem, size = 0x12000, scoped, tag = 'internal scratch']
  #allocation2 [shape = 'f32[64,512]{1,0:T(8,128)}', space=vmem, size = 0x20000, scoped, tag = 'scratch operand']
  %s0 = inlined_call_operand.vmem [shape: f32[64,128], index: 0, kind: input, shape index: {}]
  %s1 = inlined_call_operand.vmem [shape: f32[8,128], index: 1, kind: input, shape index: {}]
  %s2 = inlined_call_operand.vmem [shape: f32[8,128], index: 2, kind: input, shape index: {}]
  %s3 = inlined_call_operand.vmem [shape: f32[128,512], index: 3, kind: input, shape index: {}]
  %s4 = inlined_call_operand.vmem [shape: f32[128,512], index: 4, kind: input, shape index: {}]
  %s5 = inlined_call_operand.vmem [shape: f32[1,512], index: 5, kind: input, shape index: {}]
  %s6 = inlined_call_operand.vmem [shape: f32[8,128], index: 6, kind: output, shape index: {0}]
  %s7 = inlined_call_operand.vmem [shape: f32[8,128], index: 7, kind: output, shape index: {1}]
  %8 = xla_tuple %s6, %s7
  %s9 = sld [smem:[#allocation0]]
  $region46: #{lstm_forward.1} parent=0
    _
  %s11 = ssub.s32 1, %s9
  %s12 = scalar_select 0, %s11, %s9
  // Predicated region
  $region2: #{lstm_forward.1} parent=0 // pred_check
    _
  $region3: #{lstm_forward.1} parent=0 // pred_check_branch
    %14 = sbr.rel (0) target = $region5
  $region4: #{lstm_forward.1} parent=0 // pred_region
    _
  $region5: #{lstm_forward.1} parent=0 // pred_fallthru
    _
  // Predicated region
  $region6: #{lstm_forward.1} parent=0 // pred_check
    _
  $region7: #{lstm_forward.1} parent=0 // pred_check_branch
    %16 = sbr.rel (0) target = $region9
  $region8: #{lstm_forward.1} parent=0 // pred_region
    _
  $region9: #{lstm_forward.1} parent=0 // pred_fallthru
    _
  // Predicated region
  $region10: #{lstm_forward.1} parent=0 // pred_check
    _
  $region11: #{lstm_forward.1} parent=0 // pred_check_branch
    %18 = sbr.rel (0) target = $region13
  $region12: #{lstm_forward.1} parent=0 // pred_region
    _
  $region13: #{lstm_forward.1} parent=0 // pred_fallthru
    _
  // Predicated region
  $region14: #{lstm_forward.1} parent=0 // pred_check
    _
  $region15: #{lstm_forward.1} parent=0 // pred_check_branch
    %20 = sbr.rel (0) target = $region17
  $region16: #{lstm_forward.1} parent=0 // pred_region
    _
  $region17: #{lstm_forward.1} parent=0 // pred_fallthru
    _
  // Predicated region
  $region18: #{lstm_forward.1} parent=0 // pred_check
    _
  $region19: #{lstm_forward.1} parent=0 // pred_check_branch
    %22 = sbr.rel (0) target = $region21
  $region20: #{lstm_forward.1} parent=0 // pred_region
    _
  $region21: #{lstm_forward.1} parent=0 // pred_fallthru
    _
  // Predicated region
  $region22: #{lstm_forward.1} parent=0 // pred_check
    _
  $region23: #{lstm_forward.1} parent=0 // pred_check_branch
    %24 = sbr.rel (0) target = $region25
  $region24: #{lstm_forward.1} parent=0 // pred_region
    _
  $region25: #{lstm_forward.1} parent=0 // pred_fallthru
    _
  %p25 = scmp.eq.s32.totalorder 0, 0
  // Predicated region
  $region26: #{lstm_forward.1} parent=0 // pred_check
    %p26 = pneg %p25
  $region27: #{lstm_forward.1} parent=0 // pred_check_branch
    %28 = sbr.rel (%p26) target = $region29
  $region28: #{lstm_forward.1} parent=0 // pred_region
    %v29 = vld [vmem:[%s1] sm:$0xff]
    %30 = vst [vmem:[%s6] sm:$0xff] %v29
    %v31 = vld [vmem:[%s2] sm:$0xff]
    %32 = vst [vmem:[%s7] sm:$0xff] %v31
  $region29: #{lstm_forward.1} parent=0 // pred_fallthru
    _
  %v33 = vld [vmem:[%s0] sm:$0xff]
  %v34 = vld [vmem:[%s0 + $0x8] sm:$0xff]
  %v35 = vld [vmem:[%s0 + $0x10] sm:$0xff]
  %v36 = vld [vmem:[%s0 + $0x18] sm:$0xff]
  %v37 = vld [vmem:[%s0 + $0x20] sm:$0xff]
  %v38 = vld [vmem:[%s0 + $0x28] sm:$0xff]
  %v39 = vld [vmem:[%s0 + $0x30] sm:$0xff]
  %v40 = vld [vmem:[%s0 + $0x38] sm:$0xff]
  %v41 = vld [vmem:[%s3] sm:$0xff]
  %v42 = vld [vmem:[%s3 + $0x8] sm:$0xff]
  %v43 = vld [vmem:[%s3 + $0x10] sm:$0xff]
  %v44 = vld [vmem:[%s3 + $0x18] sm:$0xff]
  %v45 = vld [vmem:[%s3 + $0x20] sm:$0xff]
  %v46 = vld [vmem:[%s3 + $0x28] sm:$0xff]
  %v47 = vld [vmem:[%s3 + $0x30] sm:$0xff]
  %v48 = vld [vmem:[%s3 + $0x38] sm:$0xff]
  %v49 = vld [vmem:[%s3 + $0x40] sm:$0xff]
  %v50 = vld [vmem:[%s3 + $0x48] sm:$0xff]
  %v51 = vld [vmem:[%s3 + $0x50] sm:$0xff]
  %v52 = vld [vmem:[%s3 + $0x58] sm:$0xff]
  %v53 = vld [vmem:[%s3 + $0x60] sm:$0xff]
  %v54 = vld [vmem:[%s3 + $0x68] sm:$0xff]
  %v55 = vld [vmem:[%s3 + $0x70] sm:$0xff]
  %v56 = vld [vmem:[%s3 + $0x78] sm:$0xff]
  %v57 = vld [vmem:[%s3 + $0x80] sm:$0xff]
  %v58 = vld [vmem:[%s3 + $0x88] sm:$0xff]
  %v59 = vld [vmem:[%s3 + $0x90] sm:$0xff]
  %v60 = vld [vmem:[%s3 + $0x98] sm:$0xff]
  %v61 = vld [vmem:[%s3 + $0xa0] sm:$0xff]
  %v62 = vld [vmem:[%s3 + $0xa8] sm:$0xff]
  %v63 = vld [vmem:[%s3 + $0xb0] sm:$0xff]
  %v64 = vld [vmem:[%s3 + $0xb8] sm:$0xff]
  %v65 = vld [vmem:[%s3 + $0xc0] sm:$0xff]
  %v66 = vld [vmem:[%s3 + $0xc8] sm:$0xff]
  %v67 = vld [vmem:[%s3 + $0xd0] sm:$0xff]
  %v68 = vld [vmem:[%s3 + $0xd8] sm:$0xff]
  %v69 = vld [vmem:[%s3 + $0xe0] sm:$0xff]
  %v70 = vld [vmem:[%s3 + $0xe8] sm:$0xff]
  %v71 = vld [vmem:[%s3 + $0xf0] sm:$0xff]
  %v72 = vld [vmem:[%s3 + $0xf8] sm:$0xff]
  %v73 = vld [vmem:[%s3 + $0x100] sm:$0xff]
  %v74 = vld [vmem:[%s3 + $0x108] sm:$0xff]
  %v75 = vld [vmem:[%s3 + $0x110] sm:$0xff]
  %v76 = vld [vmem:[%s3 + $0x118] sm:$0xff]
  %v77 = vld [vmem:[%s3 + $0x120] sm:$0xff]
  %v78 = vld [vmem:[%s3 + $0x128] sm:$0xff]
  %v79 = vld [vmem:[%s3 + $0x130] sm:$0xff]
  %v80 = vld [vmem:[%s3 + $0x138] sm:$0xff]
  %v81 = vld [vmem:[%s3 + $0x140] sm:$0xff]
  %v82 = vld [vmem:[%s3 + $0x148] sm:$0xff]
  %v83 = vld [vmem:[%s3 + $0x150] sm:$0xff]
  %v84 = vld [vmem:[%s3 + $0x158] sm:$0xff]
  %v85 = vld [vmem:[%s3 + $0x160] sm:$0xff]
  %v86 = vld [vmem:[%s3 + $0x168] sm:$0xff]
  %v87 = vld [vmem:[%s3 + $0x170] sm:$0xff]
  %v88 = vld [vmem:[%s3 + $0x178] sm:$0xff]
  %v89 = vld [vmem:[%s3 + $0x180] sm:$0xff]
  %v90 = vld [vmem:[%s3 + $0x188] sm:$0xff]
  %v91 = vld [vmem:[%s3 + $0x190] sm:$0xff]
  %v92 = vld [vmem:[%s3 + $0x198] sm:$0xff]
  %v93 = vld [vmem:[%s3 + $0x1a0] sm:$0xff]
  %v94 = vld [vmem:[%s3 + $0x1a8] sm:$0xff]
  %v95 = vld [vmem:[%s3 + $0x1b0] sm:$0xff]
  %v96 = vld [vmem:[%s3 + $0x1b8] sm:$0xff]
  %v97 = vld [vmem:[%s3 + $0x1c0] sm:$0xff]
  %v98 = vld [vmem:[%s3 + $0x1c8] sm:$0xff]
  %v99 = vld [vmem:[%s3 + $0x1d0] sm:$0xff]
  %v100 = vld [vmem:[%s3 + $0x1d8] sm:$0xff]
  %v101 = vld [vmem:[%s3 + $0x1e0] sm:$0xff]
  %v102 = vld [vmem:[%s3 + $0x1e8] sm:$0xff]
  %v103 = vld [vmem:[%s3 + $0x1f0] sm:$0xff]
  %v104 = vld [vmem:[%s3 + $0x1f8] sm:$0xff]
  %v105 = vld [vmem:[%s5] sm:$0xf]
  %v107 = vlaneseq
  %v108 = vshrl.u32 %v107, 7
  %v109 = vsub.s32 0, %v108
  %v110 = vrot.slane %v105, %v109
  %v111 = vlaneseq
  %v112 = vshrl.u32 %v111, 7
  %v113 = vsub.s32 1, %v112
  %v114 = vrot.slane %v105, %v113
  %v115 = vlaneseq
  %v116 = vshrl.u32 %v115, 7
  %v117 = vsub.s32 2, %v116
  %v118 = vrot.slane %v105, %v117
  %v119 = vlaneseq
  %v120 = vshrl.u32 %v119, 7
  %v121 = vsub.s32 3, %v120
  %v122 = vrot.slane %v105, %v121
  %127 = vmatprep.subr.mxu0 %v102
  %128 = vmatpush1.msra.mxu0 %v101
  %129 = vmatprep.subr.mxu0 %v98
  %130 = vmatpush1.msra.mxu0 %v97
  %131 = vmatprep.subr.mxu0 %v94
  %132 = vmatpush1.msra.mxu0 %v93
  %133 = vmatprep.subr.mxu0 %v90
  %134 = vmatpush1.msra.mxu0 %v89
  %135 = vmatprep.subr.mxu0 %v86
  %136 = vmatpush1.msra.mxu0 %v85
  %137 = vmatprep.subr.mxu0 %v82
  %138 = vmatpush1.msra.mxu0 %v81
  %139 = vmatprep.subr.mxu0 %v78
  %140 = vmatpush1.msra.mxu0 %v77
  %141 = vmatprep.subr.mxu0 %v74
  %142 = vmatpush1.msra.mxu0 %v73
  %143 = vmatprep.subr.mxu0 %v70
  %144 = vmatpush1.msra.mxu0 %v69
  %145 = vmatprep.subr.mxu0 %v66
  %146 = vmatpush1.msra.mxu0 %v65
  %147 = vmatprep.subr.mxu0 %v62
  %148 = vmatpush1.msra.mxu0 %v61
  %149 = vmatprep.subr.mxu0 %v58
  %150 = vmatpush1.msra.mxu0 %v57
  %151 = vmatprep.subr.mxu0 %v54
  %152 = vmatpush1.msra.mxu0 %v53
  %153 = vmatprep.subr.mxu0 %v50
  %154 = vmatpush1.msra.mxu0 %v49
  %155 = vmatprep.subr.mxu0 %v46
  %156 = vmatpush1.msra.mxu0 %v45
  %157 = vmatprep.subr.mxu0 %v42
  %158 = vmatpush1.msra.mxu0 %v41
  %159 = vmatprep.subr.mxu0 0.0
  %160 = vmatpush2.msra.mxu0 0.0
  %161 = vmatprep.subr.mxu0 0.0
  %162 = vmatpush2.msra.mxu0 0.0
  %163 = vmatprep.subr.mxu0 0.0
  %164 = vmatpush2.msra.mxu0 0.0
  %165 = vmatprep.subr.mxu0 0.0
  %166 = vmatpush2.msra.mxu0 0.0
  %167 = vmatprep.subr.mxu0 0.0
  %168 = vmatpush2.msra.mxu0 0.0
  %169 = vmatprep.subr.mxu0 0.0
  %170 = vmatpush2.msra.mxu0 0.0
  %171 = vmatprep.subr.mxu0 0.0
  %172 = vmatpush2.msra.mxu0 0.0
  %173 = vmatprep.subr.mxu0 0.0
  %174 = vmatpush2.msra.mxu0 0.0
  %175 = vmatprep.subr.mxu0 0.0
  %176 = vmatpush2.msra.mxu0 0.0
  %177 = vmatprep.subr.mxu0 0.0
  %178 = vmatpush2.msra.mxu0 0.0
  %179 = vmatprep.subr.mxu0 0.0
  %180 = vmatpush2.msra.mxu0 0.0
  %181 = vmatprep.subr.mxu0 0.0
  %182 = vmatpush2.msra.mxu0 0.0
  %183 = vmatprep.subr.mxu0 0.0
  %184 = vmatpush2.msra.mxu0 0.0
  %185 = vmatprep.subr.mxu0 0.0
  %186 = vmatpush2.msra.mxu0 0.0
  %187 = vmatprep.subr.mxu0 0.0
  %188 = vmatpush2.msra.mxu0 0.0
  %189 = vmatprep.subr.mxu0 0.0
  %190 = vmatpush2.msra.mxu0 0.0
  %191 = vmatprep.mubr.f32.mxu0 0.0
  %192 = vmatmul.mubr.f32.gmra.mxu0 %v33
  %v193 = vpop.f32.mrf.mxu0
  %v194 = vadd.f32 %v110, %v193
  %v195 = vpop.f32.mrf.mxu0
  %v196 = vadd.f32 %v114, %v195
  %197 = vmatprep.mubr.f32.mxu0 0.0
  %198 = vmatmul.mubr.f32.gmra.mxu0 %v34
  %v199 = vpop.f32.mrf.mxu0
  %v200 = vadd.f32 %v110, %v199
  %v201 = vpop.f32.mrf.mxu0
  %v202 = vadd.f32 %v114, %v201
  %203 = vmatprep.mubr.f32.mxu0 0.0
  %204 = vmatmul.mubr.f32.gmra.mxu0 %v35
  %v205 = vpop.f32.mrf.mxu0
  %v206 = vadd.f32 %v110, %v205
  %v207 = vpop.f32.mrf.mxu0
  %v208 = vadd.f32 %v114, %v207
  %209 = vmatprep.mubr.f32.mxu0 0.0
  %210 = vmatmul.mubr.f32.gmra.mxu0 %v36
  %v211 = vpop.f32.mrf.mxu0
  %v212 = vadd.f32 %v110, %v211
  %v213 = vpop.f32.mrf.mxu0
  %v214 = vadd.f32 %v114, %v213
  %215 = vmatprep.mubr.f32.mxu0 0.0
  %216 = vmatmul.mubr.f32.gmra.mxu0 %v37
  %v217 = vpop.f32.mrf.mxu0
  %v218 = vadd.f32 %v110, %v217
  %v219 = vpop.f32.mrf.mxu0
  %v220 = vadd.f32 %v114, %v219
  %221 = vmatprep.mubr.f32.mxu0 0.0
  %222 = vmatmul.mubr.f32.gmra.mxu0 %v38
  %v223 = vpop.f32.mrf.mxu0
  %v224 = vadd.f32 %v110, %v223
  %v225 = vpop.f32.mrf.mxu0
  %v226 = vadd.f32 %v114, %v225
  %227 = vmatprep.mubr.f32.mxu0 0.0
  %228 = vmatmul.mubr.f32.gmra.mxu0 %v39
  %v229 = vpop.f32.mrf.mxu0
  %v230 = vadd.f32 %v110, %v229
  %v231 = vpop.f32.mrf.mxu0
  %v232 = vadd.f32 %v114, %v231
  %233 = vmatprep.mubr.f32.mxu0 0.0
  %234 = vmatmul.mubr.f32.gmra.mxu0 %v40
  %v235 = vpop.f32.mrf.mxu0
  %v236 = vadd.f32 %v110, %v235
  %v237 = vpop.f32.mrf.mxu0
  %v238 = vadd.f32 %v114, %v237
  %239 = vdwg.mxu0
  %240 = vmatprep.subr.mxu0 %v104
  %241 = vmatpush1.msra.mxu0 %v103
  %242 = vmatprep.subr.mxu0 %v100
  %243 = vmatpush1.msra.mxu0 %v99
  %244 = vmatprep.subr.mxu0 %v96
  %245 = vmatpush1.msra.mxu0 %v95
  %246 = vmatprep.subr.mxu0 %v92
  %247 = vmatpush1.msra.mxu0 %v91
  %248 = vmatprep.subr.mxu0 %v88
  %249 = vmatpush1.msra.mxu0 %v87
  %250 = vmatprep.subr.mxu0 %v84
  %251 = vmatpush1.msra.mxu0 %v83
  %252 = vmatprep.subr.mxu0 %v80
  %253 = vmatpush1.msra.mxu0 %v79
  %254 = vmatprep.subr.mxu0 %v76
  %255 = vmatpush1.msra.mxu0 %v75
  %256 = vmatprep.subr.mxu0 %v72
  %257 = vmatpush1.msra.mxu0 %v71
  %258 = vmatprep.subr.mxu0 %v68
  %259 = vmatpush1.msra.mxu0 %v67
  %260 = vmatprep.subr.mxu0 %v64
  %261 = vmatpush1.msra.mxu0 %v63
  %262 = vmatprep.subr.mxu0 %v60
  %263 = vmatpush1.msra.mxu0 %v59
  %264 = vmatprep.subr.mxu0 %v56
  %265 = vmatpush1.msra.mxu0 %v55
  %266 = vmatprep.subr.mxu0 %v52
  %267 = vmatpush1.msra.mxu0 %v51
  %268 = vmatprep.subr.mxu0 %v48
  %269 = vmatpush1.msra.mxu0 %v47
  %270 = vmatprep.subr.mxu0 %v44
  %271 = vmatpush1.msra.mxu0 %v43
  %272 = vmatprep.subr.mxu0 0.0
  %273 = vmatpush2.msra.mxu0 0.0
  %274 = vmatprep.subr.mxu0 0.0
  %275 = vmatpush2.msra.mxu0 0.0
  %276 = vmatprep.subr.mxu0 0.0
  %277 = vmatpush2.msra.mxu0 0.0
  %278 = vmatprep.subr.mxu0 0.0
  %279 = vmatpush2.msra.mxu0 0.0
  %280 = vmatprep.subr.mxu0 0.0
  %281 = vmatpush2.msra.mxu0 0.0
  %282 = vmatprep.subr.mxu0 0.0
  %283 = vmatpush2.msra.mxu0 0.0
  %284 = vmatprep.subr.mxu0 0.0
  %285 = vmatpush2.msra.mxu0 0.0
  %286 = vmatprep.subr.mxu0 0.0
  %287 = vmatpush2.msra.mxu0 0.0
  %288 = vmatprep.subr.mxu0 0.0
  %289 = vmatpush2.msra.mxu0 0.0
  %290 = vmatprep.subr.mxu0 0.0
  %291 = vmatpush2.msra.mxu0 0.0
  %292 = vmatprep.subr.mxu0 0.0
  %293 = vmatpush2.msra.mxu0 0.0
  %294 = vmatprep.subr.mxu0 0.0
  %295 = vmatpush2.msra.mxu0 0.0
  %296 = vmatprep.subr.mxu0 0.0
  %297 = vmatpush2.msra.mxu0 0.0
  %298 = vmatprep.subr.mxu0 0.0
  %299 = vmatpush2.msra.mxu0 0.0
  %300 = vmatprep.subr.mxu0 0.0
  %301 = vmatpush2.msra.mxu0 0.0
  %302 = vmatprep.subr.mxu0 0.0
  %303 = vmatpush2.msra.mxu0 0.0
  %304 = vmatprep.mubr.f32.mxu0 0.0
  %305 = vmatmul.mubr.f32.gmra.mxu0 %v33
  %v306 = vpop.f32.mrf.mxu0
  %v307 = vadd.f32 %v118, %v306
  %v308 = vpop.f32.mrf.mxu0
  %v309 = vadd.f32 %v122, %v308
  %310 = vmatprep.mubr.f32.mxu0 0.0
  %311 = vmatmul.mubr.f32.gmra.mxu0 %v34
  %v312 = vpop.f32.mrf.mxu0
  %v313 = vadd.f32 %v118, %v312
  %v314 = vpop.f32.mrf.mxu0
  %v315 = vadd.f32 %v122, %v314
  %316 = vmatprep.mubr.f32.mxu0 0.0
  %317 = vmatmul.mubr.f32.gmra.mxu0 %v35
  %v318 = vpop.f32.mrf.mxu0
  %v319 = vadd.f32 %v118, %v318
  %v320 = vpop.f32.mrf.mxu0
  %v321 = vadd.f32 %v122, %v320
  %322 = vmatprep.mubr.f32.mxu0 0.0
  %323 = vmatmul.mubr.f32.gmra.mxu0 %v36
  %v324 = vpop.f32.mrf.mxu0
  %v325 = vadd.f32 %v118, %v324
  %v326 = vpop.f32.mrf.mxu0
  %v327 = vadd.f32 %v122, %v326
  %328 = vmatprep.mubr.f32.mxu0 0.0
  %329 = vmatmul.mubr.f32.gmra.mxu0 %v37
  %v330 = vpop.f32.mrf.mxu0
  %v331 = vadd.f32 %v118, %v330
  %v332 = vpop.f32.mrf.mxu0
  %v333 = vadd.f32 %v122, %v332
  %334 = vmatprep.mubr.f32.mxu0 0.0
  %335 = vmatmul.mubr.f32.gmra.mxu0 %v38
  %v336 = vpop.f32.mrf.mxu0
  %v337 = vadd.f32 %v118, %v336
  %v338 = vpop.f32.mrf.mxu0
  %v339 = vadd.f32 %v122, %v338
  %340 = vmatprep.mubr.f32.mxu0 0.0
  %341 = vmatmul.mubr.f32.gmra.mxu0 %v39
  %v342 = vpop.f32.mrf.mxu0
  %v343 = vadd.f32 %v118, %v342
  %v344 = vpop.f32.mrf.mxu0
  %v345 = vadd.f32 %v122, %v344
  %346 = vmatprep.mubr.f32.mxu0 0.0
  %347 = vmatmul.mubr.f32.gmra.mxu0 %v40
  %v348 = vpop.f32.mrf.mxu0
  %v349 = vadd.f32 %v118, %v348
  %v350 = vpop.f32.mrf.mxu0
  %v351 = vadd.f32 %v122, %v350
  %352 = vdwg.mxu0
  %353 = vst [vmem:[#allocation2] sm:$0xff] %v194
  %354 = vst [vmem:[#allocation2 + $0x8] sm:$0xff] %v196
  %355 = vst [vmem:[#allocation2 + $0x10] sm:$0xff] %v307
  %356 = vst [vmem:[#allocation2 + $0x18] sm:$0xff] %v309
  %357 = vst [vmem:[#allocation2 + $0x20] sm:$0xff] %v200
  %358 = vst [vmem:[#allocation2 + $0x28] sm:$0xff] %v202
  %359 = vst [vmem:[#allocation2 + $0x30] sm:$0xff] %v313
  %360 = vst [vmem:[#allocation2 + $0x38] sm:$0xff] %v315
  %361 = vst [vmem:[#allocation2 + $0x40] sm:$0xff] %v206
  %362 = vst [vmem:[#allocation2 + $0x48] sm:$0xff] %v208
  %363 = vst [vmem:[#allocation2 + $0x50] sm:$0xff] %v319
  %364 = vst [vmem:[#allocation2 + $0x58] sm:$0xff] %v321
  %365 = vst [vmem:[#allocation2 + $0x60] sm:$0xff] %v212
  %366 = vst [vmem:[#allocation2 + $0x68] sm:$0xff] %v214
  %367 = vst [vmem:[#allocation2 + $0x70] sm:$0xff] %v325
  %368 = vst [vmem:[#allocation2 + $0x78] sm:$0xff] %v327
  %369 = vst [vmem:[#allocation2 + $0x80] sm:$0xff] %v218
  %370 = vst [vmem:[#allocation2 + $0x88] sm:$0xff] %v220
  %371 = vst [vmem:[#allocation2 + $0x90] sm:$0xff] %v331
  %372 = vst [vmem:[#allocation2 + $0x98] sm:$0xff] %v333
  %373 = vst [vmem:[#allocation2 + $0xa0] sm:$0xff] %v224
  %374 = vst [vmem:[#allocation2 + $0xa8] sm:$0xff] %v226
  %375 = vst [vmem:[#allocation2 + $0xb0] sm:$0xff] %v337
  %376 = vst [vmem:[#allocation2 + $0xb8] sm:$0xff] %v339
  %377 = vst [vmem:[#allocation2 + $0xc0] sm:$0xff] %v230
  %378 = vst [vmem:[#allocation2 + $0xc8] sm:$0xff] %v232
  %379 = vst [vmem:[#allocation2 + $0xd0] sm:$0xff] %v343
  %380 = vst [vmem:[#allocation2 + $0xd8] sm:$0xff] %v345
  %381 = vst [vmem:[#allocation2 + $0xe0] sm:$0xff] %v236
  %382 = vst [vmem:[#allocation2 + $0xe8] sm:$0xff] %v238
  %383 = vst [vmem:[#allocation2 + $0xf0] sm:$0xff] %v349
  %384 = vst [vmem:[#allocation2 + $0xf8] sm:$0xff] %v351
  %v385 = vld [vmem:[%s6] sm:$0xff]
  %v386 = vld [vmem:[%s7] sm:$0xff]
  %s387 = smul.u32 0, 4
  %s388 = smul.addr %s387, 8
  %s389 = scalar_lea.vmem [#allocation2], %s388
  %v390 = vld [vmem:[%s389] sm:$0xff]
  %v391 = vld [vmem:[%s389 + $0x8] sm:$0xff]
  %v392 = vld [vmem:[%s389 + $0x10] sm:$0xff]
  %v393 = vld [vmem:[%s389 + $0x18] sm:$0xff]
  %v394 = vld [vmem:[%s4] sm:$0xff]
  %v395 = vld [vmem:[%s4 + $0x8] sm:$0xff]
  %v396 = vld [vmem:[%s4 + $0x10] sm:$0xff]
  %v397 = vld [vmem:[%s4 + $0x18] sm:$0xff]
  %v398 = vld [vmem:[%s4 + $0x20] sm:$0xff]
  %v399 = vld [vmem:[%s4 + $0x28] sm:$0xff]
  %v400 = vld [vmem:[%s4 + $0x30] sm:$0xff]
  %v401 = vld [vmem:[%s4 + $0x38] sm:$0xff]
  %v402 = vld [vmem:[%s4 + $0x40] sm:$0xff]
  %v403 = vld [vmem:[%s4 + $0x48] sm:$0xff]
  %v404 = vld [vmem:[%s4 + $0x50] sm:$0xff]
  %v405 = vld [vmem:[%s4 + $0x58] sm:$0xff]
  %v406 = vld [vmem:[%s4 + $0x60] sm:$0xff]
  %v407 = vld [vmem:[%s4 + $0x68] sm:$0xff]
  %v408 = vld [vmem:[%s4 + $0x70] sm:$0xff]
  %v409 = vld [vmem:[%s4 + $0x78] sm:$0xff]
  %v410 = vld [vmem:[%s4 + $0x80] sm:$0xff]
  %v411 = vld [vmem:[%s4 + $0x88] sm:$0xff]
  %v412 = vld [vmem:[%s4 + $0x90] sm:$0xff]
  %v413 = vld [vmem:[%s4 + $0x98] sm:$0xff]
  %v414 = vld [vmem:[%s4 + $0xa0] sm:$0xff]
  %v415 = vld [vmem:[%s4 + $0xa8] sm:$0xff]
  %v416 = vld [vmem:[%s4 + $0xb0] sm:$0xff]
  %v417 = vld [vmem:[%s4 + $0xb8] sm:$0xff]
  %v418 = vld [vmem:[%s4 + $0xc0] sm:$0xff]
  %v419 = vld [vmem:[%s4 + $0xc8] sm:$0xff]
  %v420 = vld [vmem:[%s4 + $0xd0] sm:$0xff]
  %v421 = vld [vmem:[%s4 + $0xd8] sm:$0xff]
  %v422 = vld [vmem:[%s4 + $0xe0] sm:$0xff]
  %v423 = vld [vmem:[%s4 + $0xe8] sm:$0xff]
  %v424 = vld [vmem:[%s4 + $0xf0] sm:$0xff]
  %v425 = vld [vmem:[%s4 + $0xf8] sm:$0xff]
  %v426 = vld [vmem:[%s4 + $0x100] sm:$0xff]
  %v427 = vld [vmem:[%s4 + $0x108] sm:$0xff]
  %v428 = vld [vmem:[%s4 + $0x110] sm:$0xff]
  %v429 = vld [vmem:[%s4 + $0x118] sm:$0xff]
  %v430 = vld [vmem:[%s4 + $0x120] sm:$0xff]
  %v431 = vld [vmem:[%s4 + $0x128] sm:$0xff]
  %v432 = vld [vmem:[%s4 + $0x130] sm:$0xff]
  %v433 = vld [vmem:[%s4 + $0x138] sm:$0xff]
  %v434 = vld [vmem:[%s4 + $0x140] sm:$0xff]
  %v435 = vld [vmem:[%s4 + $0x148] sm:$0xff]
  %v436 = vld [vmem:[%s4 + $0x150] sm:$0xff]
  %v437 = vld [vmem:[%s4 + $0x158] sm:$0xff]
  %v438 = vld [vmem:[%s4 + $0x160] sm:$0xff]
  %v439 = vld [vmem:[%s4 + $0x168] sm:$0xff]
  %v440 = vld [vmem:[%s4 + $0x170] sm:$0xff]
  %v441 = vld [vmem:[%s4 + $0x178] sm:$0xff]
  %v442 = vld [vmem:[%s4 + $0x180] sm:$0xff]
  %v443 = vld [vmem:[%s4 + $0x188] sm:$0xff]
  %v444 = vld [vmem:[%s4 + $0x190] sm:$0xff]
  %v445 = vld [vmem:[%s4 + $0x198] sm:$0xff]
  %v446 = vld [vmem:[%s4 + $0x1a0] sm:$0xff]
  %v447 = vld [vmem:[%s4 + $0x1a8] sm:$0xff]
  %v448 = vld [vmem:[%s4 + $0x1b0] sm:$0xff]
  %v449 = vld [vmem:[%s4 + $0x1b8] sm:$0xff]
  %v450 = vld [vmem:[%s4 + $0x1c0] sm:$0xff]
  %v451 = vld [vmem:[%s4 + $0x1c8] sm:$0xff]
  %v452 = vld [vmem:[%s4 + $0x1d0] sm:$0xff]
  %v453 = vld [vmem:[%s4 + $0x1d8] sm:$0xff]
  %v454 = vld [vmem:[%s4 + $0x1e0] sm:$0xff]
  %v455 = vld [vmem:[%s4 + $0x1e8] sm:$0xff]
  %v456 = vld [vmem:[%s4 + $0x1f0] sm:$0xff]
  %v457 = vld [vmem:[%s4 + $0x1f8] sm:$0xff]
  %458 = vmatprep.subr.mxu0 %v455
  %459 = vmatpush1.msra.mxu0 %v454
  %460 = vmatprep.subr.mxu0 %v451
  %461 = vmatpush1.msra.mxu0 %v450
  %462 = vmatprep.subr.mxu0 %v447
  %463 = vmatpush1.msra.mxu0 %v446
  %464 = vmatprep.subr.mxu0 %v443
  %465 = vmatpush1.msra.mxu0 %v442
  %466 = vmatprep.subr.mxu0 %v439
  %467 = vmatpush1.msra.mxu0 %v438
  %468 = vmatprep.subr.mxu0 %v435
  %469 = vmatpush1.msra.mxu0 %v434
  %470 = vmatprep.subr.mxu0 %v431
  %471 = vmatpush1.msra.mxu0 %v430
  %472 = vmatprep.subr.mxu0 %v427
  %473 = vmatpush1.msra.mxu0 %v426
  %474 = vmatprep.subr.mxu0 %v423
  %475 = vmatpush1.msra.mxu0 %v422
  %476 = vmatprep.subr.mxu0 %v419
  %477 = vmatpush1.msra.mxu0 %v418
  %478 = vmatprep.subr.mxu0 %v415
  %479 = vmatpush1.msra.mxu0 %v414
  %480 = vmatprep.subr.mxu0 %v411
  %481 = vmatpush1.msra.mxu0 %v410
  %482 = vmatprep.subr.mxu0 %v407
  %483 = vmatpush1.msra.mxu0 %v406
  %484 = vmatprep.subr.mxu0 %v403
  %485 = vmatpush1.msra.mxu0 %v402
  %486 = vmatprep.subr.mxu0 %v399
  %487 = vmatpush1.msra.mxu0 %v398
  %488 = vmatprep.subr.mxu0 %v395
  %489 = vmatpush1.msra.mxu0 %v394
  %490 = vmatprep.subr.mxu0 0.0
  %491 = vmatpush2.msra.mxu0 0.0
  %492 = vmatprep.subr.mxu0 0.0
  %493 = vmatpush2.msra.mxu0 0.0
  %494 = vmatprep.subr.mxu0 0.0
  %495 = vmatpush2.msra.mxu0 0.0
  %496 = vmatprep.subr.mxu0 0.0
  %497 = vmatpush2.msra.mxu0 0.0
  %498 = vmatprep.subr.mxu0 0.0
  %499 = vmatpush2.msra.mxu0 0.0
  %500 = vmatprep.subr.mxu0 0.0
  %501 = vmatpush2.msra.mxu0 0.0
  %502 = vmatprep.subr.mxu0 0.0
  %503 = vmatpush2.msra.mxu0 0.0
  %504 = vmatprep.subr.mxu0 0.0
  %505 = vmatpush2.msra.mxu0 0.0
  %506 = vmatprep.subr.mxu0 0.0
  %507 = vmatpush2.msra.mxu0 0.0
  %508 = vmatprep.subr.mxu0 0.0
  %509 = vmatpush2.msra.mxu0 0.0
  %510 = vmatprep.subr.mxu0 0.0
  %511 = vmatpush2.msra.mxu0 0.0
  %512 = vmatprep.subr.mxu0 0.0
  %513 = vmatpush2.msra.mxu0 0.0
  %514 = vmatprep.subr.mxu0 0.0
  %515 = vmatpush2.msra.mxu0 0.0
  %516 = vmatprep.subr.mxu0 0.0
  %517 = vmatpush2.msra.mxu0 0.0
  %518 = vmatprep.subr.mxu0 0.0
  %519 = vmatpush2.msra.mxu0 0.0
  %520 = vmatprep.subr.mxu0 0.0
  %521 = vmatpush2.msra.mxu0 0.0
  %522 = vmatprep.mubr.f32.mxu0 0.0
  %523 = vmatmul.mubr.f32.gmra.mxu0 %v385
  %v524 = vpop.f32.mrf.mxu0
  %v525 = vadd.f32 0.0, %v524
  %v526 = vpop.f32.mrf.mxu0
  %v527 = vadd.f32 0.0, %v526
  %528 = vdwg.mxu0
  %529 = vmatprep.subr.mxu0 %v457
  %530 = vmatpush1.msra.mxu0 %v456
  %531 = vmatprep.subr.mxu0 %v453
  %532 = vmatpush1.msra.mxu0 %v452
  %533 = vmatprep.subr.mxu0 %v449
  %534 = vmatpush1.msra.mxu0 %v448
  %535 = vmatprep.subr.mxu0 %v445
  %536 = vmatpush1.msra.mxu0 %v444
  %537 = vmatprep.subr.mxu0 %v441
  %538 = vmatpush1.msra.mxu0 %v440
  %539 = vmatprep.subr.mxu0 %v437
  %540 = vmatpush1.msra.mxu0 %v436
  %541 = vmatprep.subr.mxu0 %v433
  %542 = vmatpush1.msra.mxu0 %v432
  %543 = vmatprep.subr.mxu0 %v429
  %544 = vmatpush1.msra.mxu0 %v428
  %545 = vmatprep.subr.mxu0 %v425
  %546 = vmatpush1.msra.mxu0 %v424
  %547 = vmatprep.subr.mxu0 %v421
  %548 = vmatpush1.msra.mxu0 %v420
  %549 = vmatprep.subr.mxu0 %v417
  %550 = vmatpush1.msra.mxu0 %v416
  %551 = vmatprep.subr.mxu0 %v413
  %552 = vmatpush1.msra.mxu0 %v412
  %553 = vmatprep.subr.mxu0 %v409
  %554 = vmatpush1.msra.mxu0 %v408
  %555 = vmatprep.subr.mxu0 %v405
  %556 = vmatpush1.msra.mxu0 %v404
  %557 = vmatprep.subr.mxu0 %v401
  %558 = vmatpush1.msra.mxu0 %v400
  %559 = vmatprep.subr.mxu0 %v397
  %560 = vmatpush1.msra.mxu0 %v396
  %561 = vmatprep.subr.mxu0 0.0
  %562 = vmatpush2.msra.mxu0 0.0
  %563 = vmatprep.subr.mxu0 0.0
  %564 = vmatpush2.msra.mxu0 0.0
  %565 = vmatprep.subr.mxu0 0.0
  %566 = vmatpush2.msra.mxu0 0.0
  %567 = vmatprep.subr.mxu0 0.0
  %568 = vmatpush2.msra.mxu0 0.0
  %569 = vmatprep.subr.mxu0 0.0
  %570 = vmatpush2.msra.mxu0 0.0
  %571 = vmatprep.subr.mxu0 0.0
  %572 = vmatpush2.msra.mxu0 0.0
  %573 = vmatprep.subr.mxu0 0.0
  %574 = vmatpush2.msra.mxu0 0.0
  %575 = vmatprep.subr.mxu0 0.0
  %576 = vmatpush2.msra.mxu0 0.0
  %577 = vmatprep.subr.mxu0 0.0
  %578 = vmatpush2.msra.mxu0 0.0
  %579 = vmatprep.subr.mxu0 0.0
  %580 = vmatpush2.msra.mxu0 0.0
  %581 = vmatprep.subr.mxu0 0.0
  %582 = vmatpush2.msra.mxu0 0.0
  %583 = vmatprep.subr.mxu0 0.0
  %584 = vmatpush2.msra.mxu0 0.0
  %585 = vmatprep.subr.mxu0 0.0
  %586 = vmatpush2.msra.mxu0 0.0
  %587 = vmatprep.subr.mxu0 0.0
  %588 = vmatpush2.msra.mxu0 0.0
  %589 = vmatprep.subr.mxu0 0.0
  %590 = vmatpush2.msra.mxu0 0.0
  %591 = vmatprep.subr.mxu0 0.0
  %592 = vmatpush2.msra.mxu0 0.0
  %593 = vmatprep.mubr.f32.mxu0 0.0
  %594 = vmatmul.mubr.f32.gmra.mxu0 %v385
  %v595 = vpop.f32.mrf.mxu0
  %v596 = vadd.f32 0.0, %v595
  %v597 = vpop.f32.mrf.mxu0
  %v598 = vadd.f32 0.0, %v597
  %599 = vdwg.mxu0
  %v600 = vadd.f32 %v390, %v525
  %v601 = vadd.f32 %v391, %v527
  %v602 = vadd.f32 %v392, %v596
  %v603 = vadd.f32 %v393, %v598
  %v604 = vxor.u32 %v600, 2147483648
  %v605 = vmul.f32 %v604, 1.442695
  %v606 = vpow.pop %v605
  %v607 = vadd.f32 %v606, 1.0
  %v608 = vrcp.pop %v607
  %v609 = vmul.f32 1.0, %v608
  %v610 = vxor.u32 %v601, 2147483648
  %v611 = vmul.f32 %v610, 1.442695
  %v612 = vpow.pop %v611
  %v613 = vadd.f32 %v612, 1.0
  %v614 = vrcp.pop %v613
  %v615 = vmul.f32 1.0, %v614
  %v616 = vtanh.pop %v602
  %v617 = vxor.u32 %v603, 2147483648
  %v618 = vmul.f32 %v617, 1.442695
  %v619 = vpow.pop %v618
  %v620 = vadd.f32 %v619, 1.0
  %v621 = vrcp.pop %v620
  %v622 = vmul.f32 1.0, %v621
  %v623 = vmul.f32 %v615, %v386
  %v624 = vmul.f32 %v609, %v616
  %v625 = vadd.f32 %v623, %v624
  %v626 = vtanh.pop %v625
  %v627 = vmul.f32 %v622, %v626
  %s628 = smul.u32 1, 4
  %s629 = smul.addr %s628, 8
  %s630 = scalar_lea.vmem [#allocation2], %s629
  %v631 = vld [vmem:[%s630] sm:$0xff]
  %v632 = vld [vmem:[%s630 + $0x8] sm:$0xff]
  %v633 = vld [vmem:[%s630 + $0x10] sm:$0xff]
  %v634 = vld [vmem:[%s630 + $0x18] sm:$0xff]
  %635 = vmatprep.subr.mxu0 %v455
  %636 = vmatpush1.msra.mxu0 %v454
  %637 = vmatprep.subr.mxu0 %v451
  %638 = vmatpush1.msra.mxu0 %v450
  %639 = vmatprep.subr.mxu0 %v447
  %640 = vmatpush1.msra.mxu0 %v446
  %641 = vmatprep.subr.mxu0 %v443
  %642 = vmatpush1.msra.mxu0 %v442
  %643 = vmatprep.subr.mxu0 %v439
  %644 = vmatpush1.msra.mxu0 %v438
  %645 = vmatprep.subr.mxu0 %v435
  %646 = vmatpush1.msra.mxu0 %v434
  %647 = vmatprep.subr.mxu0 %v431
  %648 = vmatpush1.msra.mxu0 %v430
  %649 = vmatprep.subr.mxu0 %v427
  %650 = vmatpush1.msra.mxu0 %v426
  %651 = vmatprep.subr.mxu0 %v423
  %652 = vmatpush1.msra.mxu0 %v422
  %653 = vmatprep.subr.mxu0 %v419
  %654 = vmatpush1.msra.mxu0 %v418
  %655 = vmatprep.subr.mxu0 %v415
  %656 = vmatpush1.msra.mxu0 %v414
  %657 = vmatprep.subr.mxu0 %v411
  %658 = vmatpush1.msra.mxu0 %v410
  %659 = vmatprep.subr.mxu0 %v407
  %660 = vmatpush1.msra.mxu0 %v406
  %661 = vmatprep.subr.mxu0 %v403
  %662 = vmatpush1.msra.mxu0 %v402
  %663 = vmatprep.subr.mxu0 %v399
  %664 = vmatpush1.msra.mxu0 %v398
  %665 = vmatprep.subr.mxu0 %v395
  %666 = vmatpush1.msra.mxu0 %v394
  %667 = vmatprep.subr.mxu0 0.0
  %668 = vmatpush2.msra.mxu0 0.0
  %669 = vmatprep.subr.mxu0 0.0
  %670 = vmatpush2.msra.mxu0 0.0
  %671 = vmatprep.subr.mxu0 0.0
  %672 = vmatpush2.msra.mxu0 0.0
  %673 = vmatprep.subr.mxu0 0.0
  %674 = vmatpush2.msra.mxu0 0.0
  %675 = vmatprep.subr.mxu0 0.0
  %676 = vmatpush2.msra.mxu0 0.0
  %677 = vmatprep.subr.mxu0 0.0
  %678 = vmatpush2.msra.mxu0 0.0
  %679 = vmatprep.subr.mxu0 0.0
  %680 = vmatpush2.msra.mxu0 0.0
  %681 = vmatprep.subr.mxu0 0.0
  %682 = vmatpush2.msra.mxu0 0.0
  %683 = vmatprep.subr.mxu0 0.0
  %684 = vmatpush2.msra.mxu0 0.0
  %685 = vmatprep.subr.mxu0 0.0
  %686 = vmatpush2.msra.mxu0 0.0
  %687 = vmatprep.subr.mxu0 0.0
  %688 = vmatpush2.msra.mxu0 0.0
  %689 = vmatprep.subr.mxu0 0.0
  %690 = vmatpush2.msra.mxu0 0.0
  %691 = vmatprep.subr.mxu0 0.0
  %692 = vmatpush2.msra.mxu0 0.0
  %693 = vmatprep.subr.mxu0 0.0
  %694 = vmatpush2.msra.mxu0 0.0
  %695 = vmatprep.subr.mxu0 0.0
  %696 = vmatpush2.msra.mxu0 0.0
  %697 = vmatprep.subr.mxu0 0.0
  %698 = vmatpush2.msra.mxu0 0.0
  %699 = vmatprep.mubr.f32.mxu0 0.0
  %700 = vmatmul.mubr.f32.gmra.mxu0 %v627
  %v701 = vpop.f32.mrf.mxu0
  %v702 = vadd.f32 0.0, %v701
  %v703 = vpop.f32.mrf.mxu0
  %v704 = vadd.f32 0.0, %v703
  %705 = vdwg.mxu0
  %706 = vmatprep.subr.mxu0 %v457
  %707 = vmatpush1.msra.mxu0 %v456
  %708 = vmatprep.subr.mxu0 %v453
  %709 = vmatpush1.msra.mxu0 %v452
  %710 = vmatprep.subr.mxu0 %v449
  %711 = vmatpush1.msra.mxu0 %v448
  %712 = vmatprep.subr.mxu0 %v445
  %713 = vmatpush1.msra.mxu0 %v444
  %714 = vmatprep.subr.mxu0 %v441
  %715 = vmatpush1.msra.mxu0 %v440
  %716 = vmatprep.subr.mxu0 %v437
  %717 = vmatpush1.msra.mxu0 %v436
  %718 = vmatprep.subr.mxu0 %v433
  %719 = vmatpush1.msra.mxu0 %v432
  %720 = vmatprep.subr.mxu0 %v429
  %721 = vmatpush1.msra.mxu0 %v428
  %722 = vmatprep.subr.mxu0 %v425
  %723 = vmatpush1.msra.mxu0 %v424
  %724 = vmatprep.subr.mxu0 %v421
  %725 = vmatpush1.msra.mxu0 %v420
  %726 = vmatprep.subr.mxu0 %v417
  %727 = vmatpush1.msra.mxu0 %v416
  %728 = vmatprep.subr.mxu0 %v413
  %729 = vmatpush1.msra.mxu0 %v412
  %730 = vmatprep.subr.mxu0 %v409
  %731 = vmatpush1.msra.mxu0 %v408
  %732 = vmatprep.subr.mxu0 %v405
  %733 = vmatpush1.msra.mxu0 %v404
  %734 = vmatprep.subr.mxu0 %v401
  %735 = vmatpush1.msra.mxu0 %v400
  %736 = vmatprep.subr.mxu0 %v397
  %737 = vmatpush1.msra.mxu0 %v396
  %738 = vmatprep.subr.mxu0 0.0
  %739 = vmatpush2.msra.mxu0 0.0
  %740 = vmatprep.subr.mxu0 0.0
  %741 = vmatpush2.msra.mxu0 0.0
  %742 = vmatprep.subr.mxu0 0.0
  %743 = vmatpush2.msra.mxu0 0.0
  %744 = vmatprep.subr.mxu0 0.0
  %745 = vmatpush2.msra.mxu0 0.0
  %746 = vmatprep.subr.mxu0 0.0
  %747 = vmatpush2.msra.mxu0 0.0
  %748 = vmatprep.subr.mxu0 0.0
  %749 = vmatpush2.msra.mxu0 0.0
  %750 = vmatprep.subr.mxu0 0.0
  %751 = vmatpush2.msra.mxu0 0.0
  %752 = vmatprep.subr.mxu0 0.0
  %753 = vmatpush2.msra.mxu0 0.0
  %754 = vmatprep.subr.mxu0 0.0
  %755 = vmatpush2.msra.mxu0 0.0
  %756 = vmatprep.subr.mxu0 0.0
  %757 = vmatpush2.msra.mxu0 0.0
  %758 = vmatprep.subr.mxu0 0.0
  %759 = vmatpush2.msra.mxu0 0.0
  %760 = vmatprep.subr.mxu0 0.0
  %761 = vmatpush2.msra.mxu0 0.0
  %762 = vmatprep.subr.mxu0 0.0
  %763 = vmatpush2.msra.mxu0 0.0
  %764 = vmatprep.subr.mxu0 0.0
  %765 = vmatpush2.msra.mxu0 0.0
  %766 = vmatprep.subr.mxu0 0.0
  %767 = vmatpush2.msra.mxu0 0.0
  %768 = vmatprep.subr.mxu0 0.0
  %769 = vmatpush2.msra.mxu0 0.0
  %770 = vmatprep.mubr.f32.mxu0 0.0
  %771 = vmatmul.mubr.f32.gmra.mxu0 %v627
  %v772 = vpop.f32.mrf.mxu0
  %v773 = vadd.f32 0.0, %v772
  %v774 = vpop.f32.mrf.mxu0
  %v775 = vadd.f32 0.0, %v774
  %776 = vdwg.mxu0
  %v777 = vadd.f32 %v631, %v702
  %v778 = vadd.f32 %v632, %v704
  %v779 = vadd.f32 %v633, %v773
  %v780 = vadd.f32 %v634, %v775
  %v781 = vxor.u32 %v777, 2147483648
  %v782 = vmul.f32 %v781, 1.442695
  %v783 = vpow.pop %v782
  %v784 = vadd.f32 %v783, 1.0
  %v785 = vrcp.pop %v784
  %v786 = vmul.f32 1.0, %v785
  %v787 = vxor.u32 %v778, 2147483648
  %v788 = vmul.f32 %v787, 1.442695
  %v789 = vpow.pop %v788
  %v790 = vadd.f32 %v789, 1.0
  %v791 = vrcp.pop %v790
  %v792 = vmul.f32 1.0, %v791
  %v793 = vtanh.pop %v779
  %v794 = vxor.u32 %v780, 2147483648
  %v795 = vmul.f32 %v794, 1.442695
  %v796 = vpow.pop %v795
  %v797 = vadd.f32 %v796, 1.0
  %v798 = vrcp.pop %v797
  %v799 = vmul.f32 1.0, %v798
  %v800 = vmul.f32 %v792, %v625
  %v801 = vmul.f32 %v786, %v793
  %v802 = vadd.f32 %v800, %v801
  %v803 = vtanh.pop %v802
  %v804 = vmul.f32 %v799, %v803
  %s805 = smul.u32 2, 4
  %s806 = smul.addr %s805, 8
  %s807 = scalar_lea.vmem [#allocation2], %s806
  %v808 = vld [vmem:[%s807] sm:$0xff]
  %v809 = vld [vmem:[%s807 + $0x8] sm:$0xff]
  %v810 = vld [vmem:[%s807 + $0x10] sm:$0xff]
  %v811 = vld [vmem:[%s807 + $0x18] sm:$0xff]
  %812 = vmatprep.subr.mxu0 %v455
  %813 = vmatpush1.msra.mxu0 %v454
  %814 = vmatprep.subr.mxu0 %v451
  %815 = vmatpush1.msra.mxu0 %v450
  %816 = vmatprep.subr.mxu0 %v447
  %817 = vmatpush1.msra.mxu0 %v446
  %818 = vmatprep.subr.mxu0 %v443
  %819 = vmatpush1.msra.mxu0 %v442
  %820 = vmatprep.subr.mxu0 %v439
  %821 = vmatpush1.msra.mxu0 %v438
  %822 = vmatprep.subr.mxu0 %v435
  %823 = vmatpush1.msra.mxu0 %v434
  %824 = vmatprep.subr.mxu0 %v431
  %825 = vmatpush1.msra.mxu0 %v430
  %826 = vmatprep.subr.mxu0 %v427
  %827 = vmatpush1.msra.mxu0 %v426
  %828 = vmatprep.subr.mxu0 %v423
  %829 = vmatpush1.msra.mxu0 %v422
  %830 = vmatprep.subr.mxu0 %v419
  %831 = vmatpush1.msra.mxu0 %v418
  %832 = vmatprep.subr.mxu0 %v415
  %833 = vmatpush1.msra.mxu0 %v414
  %834 = vmatprep.subr.mxu0 %v411
  %835 = vmatpush1.msra.mxu0 %v410
  %836 = vmatprep.subr.mxu0 %v407
  %837 = vmatpush1.msra.mxu0 %v406
  %838 = vmatprep.subr.mxu0 %v403
  %839 = vmatpush1.msra.mxu0 %v402
  %840 = vmatprep.subr.mxu0 %v399
  %841 = vmatpush1.msra.mxu0 %v398
  %842 = vmatprep.subr.mxu0 %v395
  %843 = vmatpush1.msra.mxu0 %v394
  %844 = vmatprep.subr.mxu0 0.0
  %845 = vmatpush2.msra.mxu0 0.0
  %846 = vmatprep.subr.mxu0 0.0
  %847 = vmatpush2.msra.mxu0 0.0
  %848 = vmatprep.subr.mxu0 0.0
  %849 = vmatpush2.msra.mxu0 0.0
  %850 = vmatprep.subr.mxu0 0.0
  %851 = vmatpush2.msra.mxu0 0.0
  %852 = vmatprep.subr.mxu0 0.0
  %853 = vmatpush2.msra.mxu0 0.0
  %854 = vmatprep.subr.mxu0 0.0
  %855 = vmatpush2.msra.mxu0 0.0
  %856 = vmatprep.subr.mxu0 0.0
  %857 = vmatpush2.msra.mxu0 0.0
  %858 = vmatprep.subr.mxu0 0.0
  %859 = vmatpush2.msra.mxu0 0.0
  %860 = vmatprep.subr.mxu0 0.0
  %861 = vmatpush2.msra.mxu0 0.0
  %862 = vmatprep.subr.mxu0 0.0
  %863 = vmatpush2.msra.mxu0 0.0
  %864 = vmatprep.subr.mxu0 0.0
  %865 = vmatpush2.msra.mxu0 0.0
  %866 = vmatprep.subr.mxu0 0.0
  %867 = vmatpush2.msra.mxu0 0.0
  %868 = vmatprep.subr.mxu0 0.0
  %869 = vmatpush2.msra.mxu0 0.0
  %870 = vmatprep.subr.mxu0 0.0
  %871 = vmatpush2.msra.mxu0 0.0
  %872 = vmatprep.subr.mxu0 0.0
  %873 = vmatpush2.msra.mxu0 0.0
  %874 = vmatprep.subr.mxu0 0.0
  %875 = vmatpush2.msra.mxu0 0.0
  %876 = vmatprep.mubr.f32.mxu0 0.0
  %877 = vmatmul.mubr.f32.gmra.mxu0 %v804
  %v878 = vpop.f32.mrf.mxu0
  %v879 = vadd.f32 0.0, %v878
  %v880 = vpop.f32.mrf.mxu0
  %v881 = vadd.f32 0.0, %v880
  %882 = vdwg.mxu0
  %883 = vmatprep.subr.mxu0 %v457
  %884 = vmatpush1.msra.mxu0 %v456
  %885 = vmatprep.subr.mxu0 %v453
  %886 = vmatpush1.msra.mxu0 %v452
  %887 = vmatprep.subr.mxu0 %v449
  %888 = vmatpush1.msra.mxu0 %v448
  %889 = vmatprep.subr.mxu0 %v445
  %890 = vmatpush1.msra.mxu0 %v444
  %891 = vmatprep.subr.mxu0 %v441
  %892 = vmatpush1.msra.mxu0 %v440
  %893 = vmatprep.subr.mxu0 %v437
  %894 = vmatpush1.msra.mxu0 %v436
  %895 = vmatprep.subr.mxu0 %v433
  %896 = vmatpush1.msra.mxu0 %v432
  %897 = vmatprep.subr.mxu0 %v429
  %898 = vmatpush1.msra.mxu0 %v428
  %899 = vmatprep.subr.mxu0 %v425
  %900 = vmatpush1.msra.mxu0 %v424
  %901 = vmatprep.subr.mxu0 %v421
  %902 = vmatpush1.msra.mxu0 %v420
  %903 = vmatprep.subr.mxu0 %v417
  %904 = vmatpush1.msra.mxu0 %v416
  %905 = vmatprep.subr.mxu0 %v413
  %906 = vmatpush1.msra.mxu0 %v412
  %907 = vmatprep.subr.mxu0 %v409
  %908 = vmatpush1.msra.mxu0 %v408
  %909 = vmatprep.subr.mxu0 %v405
  %910 = vmatpush1.msra.mxu0 %v404
  %911 = vmatprep.subr.mxu0 %v401
  %912 = vmatpush1.msra.mxu0 %v400
  %913 = vmatprep.subr.mxu0 %v397
  %914 = vmatpush1.msra.mxu0 %v396
  %915 = vmatprep.subr.mxu0 0.0
  %916 = vmatpush2.msra.mxu0 0.0
  %917 = vmatprep.subr.mxu0 0.0
  %918 = vmatpush2.msra.mxu0 0.0
  %919 = vmatprep.subr.mxu0 0.0
  %920 = vmatpush2.msra.mxu0 0.0
  %921 = vmatprep.subr.mxu0 0.0
  %922 = vmatpush2.msra.mxu0 0.0
  %923 = vmatprep.subr.mxu0 0.0
  %924 = vmatpush2.msra.mxu0 0.0
  %925 = vmatprep.subr.mxu0 0.0
  %926 = vmatpush2.msra.mxu0 0.0
  %927 = vmatprep.subr.mxu0 0.0
  %928 = vmatpush2.msra.mxu0 0.0
  %929 = vmatprep.subr.mxu0 0.0
  %930 = vmatpush2.msra.mxu0 0.0
  %931 = vmatprep.subr.mxu0 0.0
  %932 = vmatpush2.msra.mxu0 0.0
  %933 = vmatprep.subr.mxu0 0.0
  %934 = vmatpush2.msra.mxu0 0.0
  %935 = vmatprep.subr.mxu0 0.0
  %936 = vmatpush2.msra.mxu0 0.0
  %937 = vmatprep.subr.mxu0 0.0
  %938 = vmatpush2.msra.mxu0 0.0
  %939 = vmatprep.subr.mxu0 0.0
  %940 = vmatpush2.msra.mxu0 0.0
  %941 = vmatprep.subr.mxu0 0.0
  %942 = vmatpush2.msra.mxu0 0.0
  %943 = vmatprep.subr.mxu0 0.0
  %944 = vmatpush2.msra.mxu0 0.0
  %945 = vmatprep.subr.mxu0 0.0
  %946 = vmatpush2.msra.mxu0 0.0
  %947 = vmatprep.mubr.f32.mxu0 0.0
  %948 = vmatmul.mubr.f32.gmra.mxu0 %v804
  %v949 = vpop.f32.mrf.mxu0
  %v950 = vadd.f32 0.0, %v949
  %v951 = vpop.f32.mrf.mxu0
  %v952 = vadd.f32 0.0, %v951
  %953 = vdwg.mxu0
  %v954 = vadd.f32 %v808, %v879
  %v955 = vadd.f32 %v809, %v881
  %v956 = vadd.f32 %v810, %v950
  %v957 = vadd.f32 %v811, %v952
  %v958 = vxor.u32 %v954, 2147483648
  %v959 = vmul.f32 %v958, 1.442695
  %v960 = vpow.pop %v959
  %v961 = vadd.f32 %v960, 1.0
  %v962 = vrcp.pop %v961
  %v963 = vmul.f32 1.0, %v962
  %v964 = vxor.u32 %v955, 2147483648
  %v965 = vmul.f32 %v964, 1.442695
  %v966 = vpow.pop %v965
  %v967 = vadd.f32 %v966, 1.0
  %v968 = vrcp.pop %v967
  %v969 = vmul.f32 1.0, %v968
  %v970 = vtanh.pop %v956
  %v971 = vxor.u32 %v957, 2147483648
  %v972 = vmul.f32 %v971, 1.442695
  %v973 = vpow.pop %v972
  %v974 = vadd.f32 %v973, 1.0
  %v975 = vrcp.pop %v974
  %v976 = vmul.f32 1.0, %v975
  %v977 = vmul.f32 %v969, %v802
  %v978 = vmul.f32 %v963, %v970
  %v979 = vadd.f32 %v977, %v978
  %v980 = vtanh.pop %v979
  %v981 = vmul.f32 %v976, %v980
  %s982 = smul.u32 3, 4
  %s983 = smul.addr %s982, 8
  %s984 = scalar_lea.vmem [#allocation2], %s983
  %v985 = vld [vmem:[%s984] sm:$0xff]
  %v986 = vld [vmem:[%s984 + $0x8] sm:$0xff]
  %v987 = vld [vmem:[%s984 + $0x10] sm:$0xff]
  %v988 = vld [vmem:[%s984 + $0x18] sm:$0xff]
  %989 = vmatprep.subr.mxu0 %v455
  %990 = vmatpush1.msra.mxu0 %v454
  %991 = vmatprep.subr.mxu0 %v451
  %992 = vmatpush1.msra.mxu0 %v450
  %993 = vmatprep.subr.mxu0 %v447
  %994 = vmatpush1.msra.mxu0 %v446
  %995 = vmatprep.subr.mxu0 %v443
  %996 = vmatpush1.msra.mxu0 %v442
  %997 = vmatprep.subr.mxu0 %v439
  %998 = vmatpush1.msra.mxu0 %v438
  %999 = vmatprep.subr.mxu0 %v435
  %1000 = vmatpush1.msra.mxu0 %v434
  %1001 = vmatprep.subr.mxu0 %v431
  %1002 = vmatpush1.msra.mxu0 %v430
  %1003 = vmatprep.subr.mxu0 %v427
  %1004 = vmatpush1.msra.mxu0 %v426
  %1005 = vmatprep.subr.mxu0 %v423
  %1006 = vmatpush1.msra.mxu0 %v422
  %1007 = vmatprep.subr.mxu0 %v419
  %1008 = vmatpush1.msra.mxu0 %v418
  %1009 = vmatprep.subr.mxu0 %v415
  %1010 = vmatpush1.msra.mxu0 %v414
  %1011 = vmatprep.subr.mxu0 %v411
  %1012 = vmatpush1.msra.mxu0 %v410
  %1013 = vmatprep.subr.mxu0 %v407
  %1014 = vmatpush1.msra.mxu0 %v406
  %1015 = vmatprep.subr.mxu0 %v403
  %1016 = vmatpush1.msra.mxu0 %v402
  %1017 = vmatprep.subr.mxu0 %v399
  %1018 = vmatpush1.msra.mxu0 %v398
  %1019 = vmatprep.subr.mxu0 %v395
  %1020 = vmatpush1.msra.mxu0 %v394
  %1021 = vmatprep.subr.mxu0 0.0
  %1022 = vmatpush2.msra.mxu0 0.0
  %1023 = vmatprep.subr.mxu0 0.0
  %1024 = vmatpush2.msra.mxu0 0.0
  %1025 = vmatprep.subr.mxu0 0.0
  %1026 = vmatpush2.msra.mxu0 0.0
  %1027 = vmatprep.subr.mxu0 0.0
  %1028 = vmatpush2.msra.mxu0 0.0
  %1029 = vmatprep.subr.mxu0 0.0
  %1030 = vmatpush2.msra.mxu0 0.0
  %1031 = vmatprep.subr.mxu0 0.0
  %1032 = vmatpush2.msra.mxu0 0.0
  %1033 = vmatprep.subr.mxu0 0.0
  %1034 = vmatpush2.msra.mxu0 0.0
  %1035 = vmatprep.subr.mxu0 0.0
  %1036 = vmatpush2.msra.mxu0 0.0
  %1037 = vmatprep.subr.mxu0 0.0
  %1038 = vmatpush2.msra.mxu0 0.0
  %1039 = vmatprep.subr.mxu0 0.0
  %1040 = vmatpush2.msra.mxu0 0.0
  %1041 = vmatprep.subr.mxu0 0.0
  %1042 = vmatpush2.msra.mxu0 0.0
  %1043 = vmatprep.subr.mxu0 0.0
  %1044 = vmatpush2.msra.mxu0 0.0
  %1045 = vmatprep.subr.mxu0 0.0
  %1046 = vmatpush2.msra.mxu0 0.0
  %1047 = vmatprep.subr.mxu0 0.0
  %1048 = vmatpush2.msra.mxu0 0.0
  %1049 = vmatprep.subr.mxu0 0.0
  %1050 = vmatpush2.msra.mxu0 0.0
  %1051 = vmatprep.subr.mxu0 0.0
  %1052 = vmatpush2.msra.mxu0 0.0
  %1053 = vmatprep.mubr.f32.mxu0 0.0
  %1054 = vmatmul.mubr.f32.gmra.mxu0 %v981
  %v1055 = vpop.f32.mrf.mxu0
  %v1056 = vadd.f32 0.0, %v1055
  %v1057 = vpop.f32.mrf.mxu0
  %v1058 = vadd.f32 0.0, %v1057
  %1059 = vdwg.mxu0
  %1060 = vmatprep.subr.mxu0 %v457
  %1061 = vmatpush1.msra.mxu0 %v456
  %1062 = vmatprep.subr.mxu0 %v453
  %1063 = vmatpush1.msra.mxu0 %v452
  %1064 = vmatprep.subr.mxu0 %v449
  %1065 = vmatpush1.msra.mxu0 %v448
  %1066 = vmatprep.subr.mxu0 %v445
  %1067 = vmatpush1.msra.mxu0 %v444
  %1068 = vmatprep.subr.mxu0 %v441
  %1069 = vmatpush1.msra.mxu0 %v440
  %1070 = vmatprep.subr.mxu0 %v437
  %1071 = vmatpush1.msra.mxu0 %v436
  %1072 = vmatprep.subr.mxu0 %v433
  %1073 = vmatpush1.msra.mxu0 %v432
  %1074 = vmatprep.subr.mxu0 %v429
  %1075 = vmatpush1.msra.mxu0 %v428
  %1076 = vmatprep.subr.mxu0 %v425
  %1077 = vmatpush1.msra.mxu0 %v424
  %1078 = vmatprep.subr.mxu0 %v421
  %1079 = vmatpush1.msra.mxu0 %v420
  %1080 = vmatprep.subr.mxu0 %v417
  %1081 = vmatpush1.msra.mxu0 %v416
  %1082 = vmatprep.subr.mxu0 %v413
  %1083 = vmatpush1.msra.mxu0 %v412
  %1084 = vmatprep.subr.mxu0 %v409
  %1085 = vmatpush1.msra.mxu0 %v408
  %1086 = vmatprep.subr.mxu0 %v405
  %1087 = vmatpush1.msra.mxu0 %v404
  %1088 = vmatprep.subr.mxu0 %v401
  %1089 = vmatpush1.msra.mxu0 %v400
  %1090 = vmatprep.subr.mxu0 %v397
  %1091 = vmatpush1.msra.mxu0 %v396
  %1092 = vmatprep.subr.mxu0 0.0
  %1093 = vmatpush2.msra.mxu0 0.0
  %1094 = vmatprep.subr.mxu0 0.0
  %1095 = vmatpush2.msra.mxu0 0.0
  %1096 = vmatprep.subr.mxu0 0.0
  %1097 = vmatpush2.msra.mxu0 0.0
  %1098 = vmatprep.subr.mxu0 0.0
  %1099 = vmatpush2.msra.mxu0 0.0
  %1100 = vmatprep.subr.mxu0 0.0
  %1101 = vmatpush2.msra.mxu0 0.0
  %1102 = vmatprep.subr.mxu0 0.0
  %1103 = vmatpush2.msra.mxu0 0.0
  %1104 = vmatprep.subr.mxu0 0.0
  %1105 = vmatpush2.msra.mxu0 0.0
  %1106 = vmatprep.subr.mxu0 0.0
  %1107 = vmatpush2.msra.mxu0 0.0
  %1108 = vmatprep.subr.mxu0 0.0
  %1109 = vmatpush2.msra.mxu0 0.0
  %1110 = vmatprep.subr.mxu0 0.0
  %1111 = vmatpush2.msra.mxu0 0.0
  %1112 = vmatprep.subr.mxu0 0.0
  %1113 = vmatpush2.msra.mxu0 0.0
  %1114 = vmatprep.subr.mxu0 0.0
  %1115 = vmatpush2.msra.mxu0 0.0
  %1116 = vmatprep.subr.mxu0 0.0
  %1117 = vmatpush2.msra.mxu0 0.0
  %1118 = vmatprep.subr.mxu0 0.0
  %1119 = vmatpush2.msra.mxu0 0.0
  %1120 = vmatprep.subr.mxu0 0.0
  %1121 = vmatpush2.msra.mxu0 0.0
  %1122 = vmatprep.subr.mxu0 0.0
  %1123 = vmatpush2.msra.mxu0 0.0
  %1124 = vmatprep.mubr.f32.mxu0 0.0
  %1125 = vmatmul.mubr.f32.gmra.mxu0 %v981
  %v1126 = vpop.f32.mrf.mxu0
  %v1127 = vadd.f32 0.0, %v1126
  %v1128 = vpop.f32.mrf.mxu0
  %v1129 = vadd.f32 0.0, %v1128
  %1130 = vdwg.mxu0
  %v1131 = vadd.f32 %v985, %v1056
  %v1132 = vadd.f32 %v986, %v1058
  %v1133 = vadd.f32 %v987, %v1127
  %v1134 = vadd.f32 %v988, %v1129
  %v1135 = vxor.u32 %v1131, 2147483648
  %v1136 = vmul.f32 %v1135, 1.442695
  %v1137 = vpow.pop %v1136
  %v1138 = vadd.f32 %v1137, 1.0
  %v1139 = vrcp.pop %v1138
  %v1140 = vmul.f32 1.0, %v1139
  %v1141 = vxor.u32 %v1132, 2147483648
  %v1142 = vmul.f32 %v1141, 1.442695
  %v1143 = vpow.pop %v1142
  %v1144 = vadd.f32 %v1143, 1.0
  %v1145 = vrcp.pop %v1144
  %v1146 = vmul.f32 1.0, %v1145
  %v1147 = vtanh.pop %v1133
  %v1148 = vxor.u32 %v1134, 2147483648
  %v1149 = vmul.f32 %v1148, 1.442695
  %v1150 = vpow.pop %v1149
  %v1151 = vadd.f32 %v1150, 1.0
  %v1152 = vrcp.pop %v1151
  %v1153 = vmul.f32 1.0, %v1152
  %v1154 = vmul.f32 %v1146, %v979
  %v1155 = vmul.f32 %v1140, %v1147
  %v1156 = vadd.f32 %v1154, %v1155
  %v1157 = vtanh.pop %v1156
  %v1158 = vmul.f32 %v1153, %v1157
  %s1159 = smul.u32 4, 4
  %s1160 = smul.addr %s1159, 8
  %s1161 = scalar_lea.vmem [#allocation2], %s1160
  %v1162 = vld [vmem:[%s1161] sm:$0xff]
  %v1163 = vld [vmem:[%s1161 + $0x8] sm:$0xff]
  %v1164 = vld [vmem:[%s1161 + $0x10] sm:$0xff]
  %v1165 = vld [vmem:[%s1161 + $0x18] sm:$0xff]
  %1166 = vmatprep.subr.mxu0 %v455
  %1167 = vmatpush1.msra.mxu0 %v454
  %1168 = vmatprep.subr.mxu0 %v451
  %1169 = vmatpush1.msra.mxu0 %v450
  %1170 = vmatprep.subr.mxu0 %v447
  %1171 = vmatpush1.msra.mxu0 %v446
  %1172 = vmatprep.subr.mxu0 %v443
  %1173 = vmatpush1.msra.mxu0 %v442
  %1174 = vmatprep.subr.mxu0 %v439
  %1175 = vmatpush1.msra.mxu0 %v438
  %1176 = vmatprep.subr.mxu0 %v435
  %1177 = vmatpush1.msra.mxu0 %v434
  %1178 = vmatprep.subr.mxu0 %v431
  %1179 = vmatpush1.msra.mxu0 %v430
  %1180 = vmatprep.subr.mxu0 %v427
  %1181 = vmatpush1.msra.mxu0 %v426
  %1182 = vmatprep.subr.mxu0 %v423
  %1183 = vmatpush1.msra.mxu0 %v422
  %1184 = vmatprep.subr.mxu0 %v419
  %1185 = vmatpush1.msra.mxu0 %v418
  %1186 = vmatprep.subr.mxu0 %v415
  %1187 = vmatpush1.msra.mxu0 %v414
  %1188 = vmatprep.subr.mxu0 %v411
  %1189 = vmatpush1.msra.mxu0 %v410
  %1190 = vmatprep.subr.mxu0 %v407
  %1191 = vmatpush1.msra.mxu0 %v406
  %1192 = vmatprep.subr.mxu0 %v403
  %1193 = vmatpush1.msra.mxu0 %v402
  %1194 = vmatprep.subr.mxu0 %v399
  %1195 = vmatpush1.msra.mxu0 %v398
  %1196 = vmatprep.subr.mxu0 %v395
  %1197 = vmatpush1.msra.mxu0 %v394
  %1198 = vmatprep.subr.mxu0 0.0
  %1199 = vmatpush2.msra.mxu0 0.0
  %1200 = vmatprep.subr.mxu0 0.0
  %1201 = vmatpush2.msra.mxu0 0.0
  %1202 = vmatprep.subr.mxu0 0.0
  %1203 = vmatpush2.msra.mxu0 0.0
  %1204 = vmatprep.subr.mxu0 0.0
  %1205 = vmatpush2.msra.mxu0 0.0
  %1206 = vmatprep.subr.mxu0 0.0
  %1207 = vmatpush2.msra.mxu0 0.0
  %1208 = vmatprep.subr.mxu0 0.0
  %1209 = vmatpush2.msra.mxu0 0.0
  %1210 = vmatprep.subr.mxu0 0.0
  %1211 = vmatpush2.msra.mxu0 0.0
  %1212 = vmatprep.subr.mxu0 0.0
  %1213 = vmatpush2.msra.mxu0 0.0
  %1214 = vmatprep.subr.mxu0 0.0
  %1215 = vmatpush2.msra.mxu0 0.0
  %1216 = vmatprep.subr.mxu0 0.0
  %1217 = vmatpush2.msra.mxu0 0.0
  %1218 = vmatprep.subr.mxu0 0.0
  %1219 = vmatpush2.msra.mxu0 0.0
  %1220 = vmatprep.subr.mxu0 0.0
  %1221 = vmatpush2.msra.mxu0 0.0
  %1222 = vmatprep.subr.mxu0 0.0
  %1223 = vmatpush2.msra.mxu0 0.0
  %1224 = vmatprep.subr.mxu0 0.0
  %1225 = vmatpush2.msra.mxu0 0.0
  %1226 = vmatprep.subr.mxu0 0.0
  %1227 = vmatpush2.msra.mxu0 0.0
  %1228 = vmatprep.subr.mxu0 0.0
  %1229 = vmatpush2.msra.mxu0 0.0
  %1230 = vmatprep.mubr.f32.mxu0 0.0
  %1231 = vmatmul.mubr.f32.gmra.mxu0 %v1158
  %v1232 = vpop.f32.mrf.mxu0
  %v1233 = vadd.f32 0.0, %v1232
  %v1234 = vpop.f32.mrf.mxu0
  %v1235 = vadd.f32 0.0, %v1234
  %1236 = vdwg.mxu0
  %1237 = vmatprep.subr.mxu0 %v457
  %1238 = vmatpush1.msra.mxu0 %v456
  %1239 = vmatprep.subr.mxu0 %v453
  %1240 = vmatpush1.msra.mxu0 %v452
  %1241 = vmatprep.subr.mxu0 %v449
  %1242 = vmatpush1.msra.mxu0 %v448
  %1243 = vmatprep.subr.mxu0 %v445
  %1244 = vmatpush1.msra.mxu0 %v444
  %1245 = vmatprep.subr.mxu0 %v441
  %1246 = vmatpush1.msra.mxu0 %v440
  %1247 = vmatprep.subr.mxu0 %v437
  %1248 = vmatpush1.msra.mxu0 %v436
  %1249 = vmatprep.subr.mxu0 %v433
  %1250 = vmatpush1.msra.mxu0 %v432
  %1251 = vmatprep.subr.mxu0 %v429
  %1252 = vmatpush1.msra.mxu0 %v428
  %1253 = vmatprep.subr.mxu0 %v425
  %1254 = vmatpush1.msra.mxu0 %v424
  %1255 = vmatprep.subr.mxu0 %v421
  %1256 = vmatpush1.msra.mxu0 %v420
  %1257 = vmatprep.subr.mxu0 %v417
  %1258 = vmatpush1.msra.mxu0 %v416
  %1259 = vmatprep.subr.mxu0 %v413
  %1260 = vmatpush1.msra.mxu0 %v412
  %1261 = vmatprep.subr.mxu0 %v409
  %1262 = vmatpush1.msra.mxu0 %v408
  %1263 = vmatprep.subr.mxu0 %v405
  %1264 = vmatpush1.msra.mxu0 %v404
  %1265 = vmatprep.subr.mxu0 %v401
  %1266 = vmatpush1.msra.mxu0 %v400
  %1267 = vmatprep.subr.mxu0 %v397
  %1268 = vmatpush1.msra.mxu0 %v396
  %1269 = vmatprep.subr.mxu0 0.0
  %1270 = vmatpush2.msra.mxu0 0.0
  %1271 = vmatprep.subr.mxu0 0.0
  %1272 = vmatpush2.msra.mxu0 0.0
  %1273 = vmatprep.subr.mxu0 0.0
  %1274 = vmatpush2.msra.mxu0 0.0
  %1275 = vmatprep.subr.mxu0 0.0
  %1276 = vmatpush2.msra.mxu0 0.0
  %1277 = vmatprep.subr.mxu0 0.0
  %1278 = vmatpush2.msra.mxu0 0.0
  %1279 = vmatprep.subr.mxu0 0.0
  %1280 = vmatpush2.msra.mxu0 0.0
  %1281 = vmatprep.subr.mxu0 0.0
  %1282 = vmatpush2.msra.mxu0 0.0
  %1283 = vmatprep.subr.mxu0 0.0
  %1284 = vmatpush2.msra.mxu0 0.0
  %1285 = vmatprep.subr.mxu0 0.0
  %1286 = vmatpush2.msra.mxu0 0.0
  %1287 = vmatprep.subr.mxu0 0.0
  %1288 = vmatpush2.msra.mxu0 0.0
  %1289 = vmatprep.subr.mxu0 0.0
  %1290 = vmatpush2.msra.mxu0 0.0
  %1291 = vmatprep.subr.mxu0 0.0
  %1292 = vmatpush2.msra.mxu0 0.0
  %1293 = vmatprep.subr.mxu0 0.0
  %1294 = vmatpush2.msra.mxu0 0.0
  %1295 = vmatprep.subr.mxu0 0.0
  %1296 = vmatpush2.msra.mxu0 0.0
  %1297 = vmatprep.subr.mxu0 0.0
  %1298 = vmatpush2.msra.mxu0 0.0
  %1299 = vmatprep.subr.mxu0 0.0
  %1300 = vmatpush2.msra.mxu0 0.0
  %1301 = vmatprep.mubr.f32.mxu0 0.0
  %1302 = vmatmul.mubr.f32.gmra.mxu0 %v1158
  %v1303 = vpop.f32.mrf.mxu0
  %v1304 = vadd.f32 0.0, %v1303
  %v1305 = vpop.f32.mrf.mxu0
  %v1306 = vadd.f32 0.0, %v1305
  %1307 = vdwg.mxu0
  %v1308 = vadd.f32 %v1162, %v1233
  %v1309 = vadd.f32 %v1163, %v1235
  %v1310 = vadd.f32 %v1164, %v1304
  %v1311 = vadd.f32 %v1165, %v1306
  %v1312 = vxor.u32 %v1308, 2147483648
  %v1313 = vmul.f32 %v1312, 1.442695
  %v1314 = vpow.pop %v1313
  %v1315 = vadd.f32 %v1314, 1.0
  %v1316 = vrcp.pop %v1315
  %v1317 = vmul.f32 1.0, %v1316
  %v1318 = vxor.u32 %v1309, 2147483648
  %v1319 = vmul.f32 %v1318, 1.442695
  %v1320 = vpow.pop %v1319
  %v1321 = vadd.f32 %v1320, 1.0
  %v1322 = vrcp.pop %v1321
  %v1323 = vmul.f32 1.0, %v1322
  %v1324 = vtanh.pop %v1310
  %v1325 = vxor.u32 %v1311, 2147483648
  %v1326 = vmul.f32 %v1325, 1.442695
  %v1327 = vpow.pop %v1326
  %v1328 = vadd.f32 %v1327, 1.0
  %v1329 = vrcp.pop %v1328
  %v1330 = vmul.f32 1.0, %v1329
  %v1331 = vmul.f32 %v1323, %v1156
  %v1332 = vmul.f32 %v1317, %v1324
  %v1333 = vadd.f32 %v1331, %v1332
  %v1334 = vtanh.pop %v1333
  %v1335 = vmul.f32 %v1330, %v1334
  %s1336 = smul.u32 5, 4
  %s1337 = smul.addr %s1336, 8
  %s1338 = scalar_lea.vmem [#allocation2], %s1337
  %v1339 = vld [vmem:[%s1338] sm:$0xff]
  %v1340 = vld [vmem:[%s1338 + $0x8] sm:$0xff]
  %v1341 = vld [vmem:[%s1338 + $0x10] sm:$0xff]
  %v1342 = vld [vmem:[%s1338 + $0x18] sm:$0xff]
  %1343 = vmatprep.subr.mxu0 %v455
  %1344 = vmatpush1.msra.mxu0 %v454
  %1345 = vmatprep.subr.mxu0 %v451
  %1346 = vmatpush1.msra.mxu0 %v450
  %1347 = vmatprep.subr.mxu0 %v447
  %1348 = vmatpush1.msra.mxu0 %v446
  %1349 = vmatprep.subr.mxu0 %v443
  %1350 = vmatpush1.msra.mxu0 %v442
  %1351 = vmatprep.subr.mxu0 %v439
  %1352 = vmatpush1.msra.mxu0 %v438
  %1353 = vmatprep.subr.mxu0 %v435
  %1354 = vmatpush1.msra.mxu0 %v434
  %1355 = vmatprep.subr.mxu0 %v431
  %1356 = vmatpush1.msra.mxu0 %v430
  %1357 = vmatprep.subr.mxu0 %v427
  %1358 = vmatpush1.msra.mxu0 %v426
  %1359 = vmatprep.subr.mxu0 %v423
  %1360 = vmatpush1.msra.mxu0 %v422
  %1361 = vmatprep.subr.mxu0 %v419
  %1362 = vmatpush1.msra.mxu0 %v418
  %1363 = vmatprep.subr.mxu0 %v415
  %1364 = vmatpush1.msra.mxu0 %v414
  %1365 = vmatprep.subr.mxu0 %v411
  %1366 = vmatpush1.msra.mxu0 %v410
  %1367 = vmatprep.subr.mxu0 %v407
  %1368 = vmatpush1.msra.mxu0 %v406
  %1369 = vmatprep.subr.mxu0 %v403
  %1370 = vmatpush1.msra.mxu0 %v402
  %1371 = vmatprep.subr.mxu0 %v399
  %1372 = vmatpush1.msra.mxu0 %v398
  %1373 = vmatprep.subr.mxu0 %v395
  %1374 = vmatpush1.msra.mxu0 %v394
  %1375 = vmatprep.subr.mxu0 0.0
  %1376 = vmatpush2.msra.mxu0 0.0
  %1377 = vmatprep.subr.mxu0 0.0
  %1378 = vmatpush2.msra.mxu0 0.0
  %1379 = vmatprep.subr.mxu0 0.0
  %1380 = vmatpush2.msra.mxu0 0.0
  %1381 = vmatprep.subr.mxu0 0.0
  %1382 = vmatpush2.msra.mxu0 0.0
  %1383 = vmatprep.subr.mxu0 0.0
  %1384 = vmatpush2.msra.mxu0 0.0
  %1385 = vmatprep.subr.mxu0 0.0
  %1386 = vmatpush2.msra.mxu0 0.0
  %1387 = vmatprep.subr.mxu0 0.0
  %1388 = vmatpush2.msra.mxu0 0.0
  %1389 = vmatprep.subr.mxu0 0.0
  %1390 = vmatpush2.msra.mxu0 0.0
  %1391 = vmatprep.subr.mxu0 0.0
  %1392 = vmatpush2.msra.mxu0 0.0
  %1393 = vmatprep.subr.mxu0 0.0
  %1394 = vmatpush2.msra.mxu0 0.0
  %1395 = vmatprep.subr.mxu0 0.0
  %1396 = vmatpush2.msra.mxu0 0.0
  %1397 = vmatprep.subr.mxu0 0.0
  %1398 = vmatpush2.msra.mxu0 0.0
  %1399 = vmatprep.subr.mxu0 0.0
  %1400 = vmatpush2.msra.mxu0 0.0
  %1401 = vmatprep.subr.mxu0 0.0
  %1402 = vmatpush2.msra.mxu0 0.0
  %1403 = vmatprep.subr.mxu0 0.0
  %1404 = vmatpush2.msra.mxu0 0.0
  %1405 = vmatprep.subr.mxu0 0.0
  %1406 = vmatpush2.msra.mxu0 0.0
  %1407 = vmatprep.mubr.f32.mxu0 0.0
  %1408 = vmatmul.mubr.f32.gmra.mxu0 %v1335
  %v1409 = vpop.f32.mrf.mxu0
  %v1410 = vadd.f32 0.0, %v1409
  %v1411 = vpop.f32.mrf.mxu0
  %v1412 = vadd.f32 0.0, %v1411
  %1413 = vdwg.mxu0
  %1414 = vmatprep.subr.mxu0 %v457
  %1415 = vmatpush1.msra.mxu0 %v456
  %1416 = vmatprep.subr.mxu0 %v453
  %1417 = vmatpush1.msra.mxu0 %v452
  %1418 = vmatprep.subr.mxu0 %v449
  %1419 = vmatpush1.msra.mxu0 %v448
  %1420 = vmatprep.subr.mxu0 %v445
  %1421 = vmatpush1.msra.mxu0 %v444
  %1422 = vmatprep.subr.mxu0 %v441
  %1423 = vmatpush1.msra.mxu0 %v440
  %1424 = vmatprep.subr.mxu0 %v437
  %1425 = vmatpush1.msra.mxu0 %v436
  %1426 = vmatprep.subr.mxu0 %v433
  %1427 = vmatpush1.msra.mxu0 %v432
  %1428 = vmatprep.subr.mxu0 %v429
  %1429 = vmatpush1.msra.mxu0 %v428
  %1430 = vmatprep.subr.mxu0 %v425
  %1431 = vmatpush1.msra.mxu0 %v424
  %1432 = vmatprep.subr.mxu0 %v421
  %1433 = vmatpush1.msra.mxu0 %v420
  %1434 = vmatprep.subr.mxu0 %v417
  %1435 = vmatpush1.msra.mxu0 %v416
  %1436 = vmatprep.subr.mxu0 %v413
  %1437 = vmatpush1.msra.mxu0 %v412
  %1438 = vmatprep.subr.mxu0 %v409
  %1439 = vmatpush1.msra.mxu0 %v408
  %1440 = vmatprep.subr.mxu0 %v405
  %1441 = vmatpush1.msra.mxu0 %v404
  %1442 = vmatprep.subr.mxu0 %v401
  %1443 = vmatpush1.msra.mxu0 %v400
  %1444 = vmatprep.subr.mxu0 %v397
  %1445 = vmatpush1.msra.mxu0 %v396
  %1446 = vmatprep.subr.mxu0 0.0
  %1447 = vmatpush2.msra.mxu0 0.0
  %1448 = vmatprep.subr.mxu0 0.0
  %1449 = vmatpush2.msra.mxu0 0.0
  %1450 = vmatprep.subr.mxu0 0.0
  %1451 = vmatpush2.msra.mxu0 0.0
  %1452 = vmatprep.subr.mxu0 0.0
  %1453 = vmatpush2.msra.mxu0 0.0
  %1454 = vmatprep.subr.mxu0 0.0
  %1455 = vmatpush2.msra.mxu0 0.0
  %1456 = vmatprep.subr.mxu0 0.0
  %1457 = vmatpush2.msra.mxu0 0.0
  %1458 = vmatprep.subr.mxu0 0.0
  %1459 = vmatpush2.msra.mxu0 0.0
  %1460 = vmatprep.subr.mxu0 0.0
  %1461 = vmatpush2.msra.mxu0 0.0
  %1462 = vmatprep.subr.mxu0 0.0
  %1463 = vmatpush2.msra.mxu0 0.0
  %1464 = vmatprep.subr.mxu0 0.0
  %1465 = vmatpush2.msra.mxu0 0.0
  %1466 = vmatprep.subr.mxu0 0.0
  %1467 = vmatpush2.msra.mxu0 0.0
  %1468 = vmatprep.subr.mxu0 0.0
  %1469 = vmatpush2.msra.mxu0 0.0
  %1470 = vmatprep.subr.mxu0 0.0
  %1471 = vmatpush2.msra.mxu0 0.0
  %1472 = vmatprep.subr.mxu0 0.0
  %1473 = vmatpush2.msra.mxu0 0.0
  %1474 = vmatprep.subr.mxu0 0.0
  %1475 = vmatpush2.msra.mxu0 0.0
  %1476 = vmatprep.subr.mxu0 0.0
  %1477 = vmatpush2.msra.mxu0 0.0
  %1478 = vmatprep.mubr.f32.mxu0 0.0
  %1479 = vmatmul.mubr.f32.gmra.mxu0 %v1335
  %v1480 = vpop.f32.mrf.mxu0
  %v1481 = vadd.f32 0.0, %v1480
  %v1482 = vpop.f32.mrf.mxu0
  %v1483 = vadd.f32 0.0, %v1482
  %1484 = vdwg.mxu0
  %v1485 = vadd.f32 %v1339, %v1410
  %v1486 = vadd.f32 %v1340, %v1412
  %v1487 = vadd.f32 %v1341, %v1481
  %v1488 = vadd.f32 %v1342, %v1483
  %v1489 = vxor.u32 %v1485, 2147483648
  %v1490 = vmul.f32 %v1489, 1.442695
  %v1491 = vpow.pop %v1490
  %v1492 = vadd.f32 %v1491, 1.0
  %v1493 = vrcp.pop %v1492
  %v1494 = vmul.f32 1.0, %v1493
  %v1495 = vxor.u32 %v1486, 2147483648
  %v1496 = vmul.f32 %v1495, 1.442695
  %v1497 = vpow.pop %v1496
  %v1498 = vadd.f32 %v1497, 1.0
  %v1499 = vrcp.pop %v1498
  %v1500 = vmul.f32 1.0, %v1499
  %v1501 = vtanh.pop %v1487
  %v1502 = vxor.u32 %v1488, 2147483648
  %v1503 = vmul.f32 %v1502, 1.442695
  %v1504 = vpow.pop %v1503
  %v1505 = vadd.f32 %v1504, 1.0
  %v1506 = vrcp.pop %v1505
  %v1507 = vmul.f32 1.0, %v1506
  %v1508 = vmul.f32 %v1500, %v1333
  %v1509 = vmul.f32 %v1494, %v1501
  %v1510 = vadd.f32 %v1508, %v1509
  %v1511 = vtanh.pop %v1510
  %v1512 = vmul.f32 %v1507, %v1511
  %s1513 = smul.u32 6, 4
  %s1514 = smul.addr %s1513, 8
  %s1515 = scalar_lea.vmem [#allocation2], %s1514
  %v1516 = vld [vmem:[%s1515] sm:$0xff]
  %v1517 = vld [vmem:[%s1515 + $0x8] sm:$0xff]
  %v1518 = vld [vmem:[%s1515 + $0x10] sm:$0xff]
  %v1519 = vld [vmem:[%s1515 + $0x18] sm:$0xff]
  %1520 = vmatprep.subr.mxu0 %v455
  %1521 = vmatpush1.msra.mxu0 %v454
  %1522 = vmatprep.subr.mxu0 %v451
  %1523 = vmatpush1.msra.mxu0 %v450
  %1524 = vmatprep.subr.mxu0 %v447
  %1525 = vmatpush1.msra.mxu0 %v446
  %1526 = vmatprep.subr.mxu0 %v443
  %1527 = vmatpush1.msra.mxu0 %v442
  %1528 = vmatprep.subr.mxu0 %v439
  %1529 = vmatpush1.msra.mxu0 %v438
  %1530 = vmatprep.subr.mxu0 %v435
  %1531 = vmatpush1.msra.mxu0 %v434
  %1532 = vmatprep.subr.mxu0 %v431
  %1533 = vmatpush1.msra.mxu0 %v430
  %1534 = vmatprep.subr.mxu0 %v427
  %1535 = vmatpush1.msra.mxu0 %v426
  %1536 = vmatprep.subr.mxu0 %v423
  %1537 = vmatpush1.msra.mxu0 %v422
  %1538 = vmatprep.subr.mxu0 %v419
  %1539 = vmatpush1.msra.mxu0 %v418
  %1540 = vmatprep.subr.mxu0 %v415
  %1541 = vmatpush1.msra.mxu0 %v414
  %1542 = vmatprep.subr.mxu0 %v411
  %1543 = vmatpush1.msra.mxu0 %v410
  %1544 = vmatprep.subr.mxu0 %v407
  %1545 = vmatpush1.msra.mxu0 %v406
  %1546 = vmatprep.subr.mxu0 %v403
  %1547 = vmatpush1.msra.mxu0 %v402
  %1548 = vmatprep.subr.mxu0 %v399
  %1549 = vmatpush1.msra.mxu0 %v398
  %1550 = vmatprep.subr.mxu0 %v395
  %1551 = vmatpush1.msra.mxu0 %v394
  %1552 = vmatprep.subr.mxu0 0.0
  %1553 = vmatpush2.msra.mxu0 0.0
  %1554 = vmatprep.subr.mxu0 0.0
  %1555 = vmatpush2.msra.mxu0 0.0
  %1556 = vmatprep.subr.mxu0 0.0
  %1557 = vmatpush2.msra.mxu0 0.0
  %1558 = vmatprep.subr.mxu0 0.0
  %1559 = vmatpush2.msra.mxu0 0.0
  %1560 = vmatprep.subr.mxu0 0.0
  %1561 = vmatpush2.msra.mxu0 0.0
  %1562 = vmatprep.subr.mxu0 0.0
  %1563 = vmatpush2.msra.mxu0 0.0
  %1564 = vmatprep.subr.mxu0 0.0
  %1565 = vmatpush2.msra.mxu0 0.0
  %1566 = vmatprep.subr.mxu0 0.0
  %1567 = vmatpush2.msra.mxu0 0.0
  %1568 = vmatprep.subr.mxu0 0.0
  %1569 = vmatpush2.msra.mxu0 0.0
  %1570 = vmatprep.subr.mxu0 0.0
  %1571 = vmatpush2.msra.mxu0 0.0
  %1572 = vmatprep.subr.mxu0 0.0
  %1573 = vmatpush2.msra.mxu0 0.0
  %1574 = vmatprep.subr.mxu0 0.0
  %1575 = vmatpush2.msra.mxu0 0.0
  %1576 = vmatprep.subr.mxu0 0.0
  %1577 = vmatpush2.msra.mxu0 0.0
  %1578 = vmatprep.subr.mxu0 0.0
  %1579 = vmatpush2.msra.mxu0 0.0
  %1580 = vmatprep.subr.mxu0 0.0
  %1581 = vmatpush2.msra.mxu0 0.0
  %1582 = vmatprep.subr.mxu0 0.0
  %1583 = vmatpush2.msra.mxu0 0.0
  %1584 = vmatprep.mubr.f32.mxu0 0.0
  %1585 = vmatmul.mubr.f32.gmra.mxu0 %v1512
  %v1586 = vpop.f32.mrf.mxu0
  %v1587 = vadd.f32 0.0, %v1586
  %v1588 = vpop.f32.mrf.mxu0
  %v1589 = vadd.f32 0.0, %v1588
  %1590 = vdwg.mxu0
  %1591 = vmatprep.subr.mxu0 %v457
  %1592 = vmatpush1.msra.mxu0 %v456
  %1593 = vmatprep.subr.mxu0 %v453
  %1594 = vmatpush1.msra.mxu0 %v452
  %1595 = vmatprep.subr.mxu0 %v449
  %1596 = vmatpush1.msra.mxu0 %v448
  %1597 = vmatprep.subr.mxu0 %v445
  %1598 = vmatpush1.msra.mxu0 %v444
  %1599 = vmatprep.subr.mxu0 %v441
  %1600 = vmatpush1.msra.mxu0 %v440
  %1601 = vmatprep.subr.mxu0 %v437
  %1602 = vmatpush1.msra.mxu0 %v436
  %1603 = vmatprep.subr.mxu0 %v433
  %1604 = vmatpush1.msra.mxu0 %v432
  %1605 = vmatprep.subr.mxu0 %v429
  %1606 = vmatpush1.msra.mxu0 %v428
  %1607 = vmatprep.subr.mxu0 %v425
  %1608 = vmatpush1.msra.mxu0 %v424
  %1609 = vmatprep.subr.mxu0 %v421
  %1610 = vmatpush1.msra.mxu0 %v420
  %1611 = vmatprep.subr.mxu0 %v417
  %1612 = vmatpush1.msra.mxu0 %v416
  %1613 = vmatprep.subr.mxu0 %v413
  %1614 = vmatpush1.msra.mxu0 %v412
  %1615 = vmatprep.subr.mxu0 %v409
  %1616 = vmatpush1.msra.mxu0 %v408
  %1617 = vmatprep.subr.mxu0 %v405
  %1618 = vmatpush1.msra.mxu0 %v404
  %1619 = vmatprep.subr.mxu0 %v401
  %1620 = vmatpush1.msra.mxu0 %v400
  %1621 = vmatprep.subr.mxu0 %v397
  %1622 = vmatpush1.msra.mxu0 %v396
  %1623 = vmatprep.subr.mxu0 0.0
  %1624 = vmatpush2.msra.mxu0 0.0
  %1625 = vmatprep.subr.mxu0 0.0
  %1626 = vmatpush2.msra.mxu0 0.0
  %1627 = vmatprep.subr.mxu0 0.0
  %1628 = vmatpush2.msra.mxu0 0.0
  %1629 = vmatprep.subr.mxu0 0.0
  %1630 = vmatpush2.msra.mxu0 0.0
  %1631 = vmatprep.subr.mxu0 0.0
  %1632 = vmatpush2.msra.mxu0 0.0
  %1633 = vmatprep.subr.mxu0 0.0
  %1634 = vmatpush2.msra.mxu0 0.0
  %1635 = vmatprep.subr.mxu0 0.0
  %1636 = vmatpush2.msra.mxu0 0.0
  %1637 = vmatprep.subr.mxu0 0.0
  %1638 = vmatpush2.msra.mxu0 0.0
  %1639 = vmatprep.subr.mxu0 0.0
  %1640 = vmatpush2.msra.mxu0 0.0
  %1641 = vmatprep.subr.mxu0 0.0
  %1642 = vmatpush2.msra.mxu0 0.0
  %1643 = vmatprep.subr.mxu0 0.0
  %1644 = vmatpush2.msra.mxu0 0.0
  %1645 = vmatprep.subr.mxu0 0.0
  %1646 = vmatpush2.msra.mxu0 0.0
  %1647 = vmatprep.subr.mxu0 0.0
  %1648 = vmatpush2.msra.mxu0 0.0
  %1649 = vmatprep.subr.mxu0 0.0
  %1650 = vmatpush2.msra.mxu0 0.0
  %1651 = vmatprep.subr.mxu0 0.0
  %1652 = vmatpush2.msra.mxu0 0.0
  %1653 = vmatprep.subr.mxu0 0.0
  %1654 = vmatpush2.msra.mxu0 0.0
  %1655 = vmatprep.mubr.f32.mxu0 0.0
  %1656 = vmatmul.mubr.f32.gmra.mxu0 %v1512
  %v1657 = vpop.f32.mrf.mxu0
  %v1658 = vadd.f32 0.0, %v1657
  %v1659 = vpop.f32.mrf.mxu0
  %v1660 = vadd.f32 0.0, %v1659
  %1661 = vdwg.mxu0
  %v1662 = vadd.f32 %v1516, %v1587
  %v1663 = vadd.f32 %v1517, %v1589
  %v1664 = vadd.f32 %v1518, %v1658
  %v1665 = vadd.f32 %v1519, %v1660
  %v1666 = vxor.u32 %v1662, 2147483648
  %v1667 = vmul.f32 %v1666, 1.442695
  %v1668 = vpow.pop %v1667
  %v1669 = vadd.f32 %v1668, 1.0
  %v1670 = vrcp.pop %v1669
  %v1671 = vmul.f32 1.0, %v1670
  %v1672 = vxor.u32 %v1663, 2147483648
  %v1673 = vmul.f32 %v1672, 1.442695
  %v1674 = vpow.pop %v1673
  %v1675 = vadd.f32 %v1674, 1.0
  %v1676 = vrcp.pop %v1675
  %v1677 = vmul.f32 1.0, %v1676
  %v1678 = vtanh.pop %v1664
  %v1679 = vxor.u32 %v1665, 2147483648
  %v1680 = vmul.f32 %v1679, 1.442695
  %v1681 = vpow.pop %v1680
  %v1682 = vadd.f32 %v1681, 1.0
  %v1683 = vrcp.pop %v1682
  %v1684 = vmul.f32 1.0, %v1683
  %v1685 = vmul.f32 %v1677, %v1510
  %v1686 = vmul.f32 %v1671, %v1678
  %v1687 = vadd.f32 %v1685, %v1686
  %v1688 = vtanh.pop %v1687
  %v1689 = vmul.f32 %v1684, %v1688
  %s1690 = smul.u32 7, 4
  %s1691 = smul.addr %s1690, 8
  %s1692 = scalar_lea.vmem [#allocation2], %s1691
  %v1693 = vld [vmem:[%s1692] sm:$0xff]
  %v1694 = vld [vmem:[%s1692 + $0x8] sm:$0xff]
  %v1695 = vld [vmem:[%s1692 + $0x10] sm:$0xff]
  %v1696 = vld [vmem:[%s1692 + $0x18] sm:$0xff]
  %1697 = vmatprep.subr.mxu0 %v455
  %1698 = vmatpush1.msra.mxu0 %v454
  %1699 = vmatprep.subr.mxu0 %v451
  %1700 = vmatpush1.msra.mxu0 %v450
  %1701 = vmatprep.subr.mxu0 %v447
  %1702 = vmatpush1.msra.mxu0 %v446
  %1703 = vmatprep.subr.mxu0 %v443
  %1704 = vmatpush1.msra.mxu0 %v442
  %1705 = vmatprep.subr.mxu0 %v439
  %1706 = vmatpush1.msra.mxu0 %v438
  %1707 = vmatprep.subr.mxu0 %v435
  %1708 = vmatpush1.msra.mxu0 %v434
  %1709 = vmatprep.subr.mxu0 %v431
  %1710 = vmatpush1.msra.mxu0 %v430
  %1711 = vmatprep.subr.mxu0 %v427
  %1712 = vmatpush1.msra.mxu0 %v426
  %1713 = vmatprep.subr.mxu0 %v423
  %1714 = vmatpush1.msra.mxu0 %v422
  %1715 = vmatprep.subr.mxu0 %v419
  %1716 = vmatpush1.msra.mxu0 %v418
  %1717 = vmatprep.subr.mxu0 %v415
  %1718 = vmatpush1.msra.mxu0 %v414
  %1719 = vmatprep.subr.mxu0 %v411
  %1720 = vmatpush1.msra.mxu0 %v410
  %1721 = vmatprep.subr.mxu0 %v407
  %1722 = vmatpush1.msra.mxu0 %v406
  %1723 = vmatprep.subr.mxu0 %v403
  %1724 = vmatpush1.msra.mxu0 %v402
  %1725 = vmatprep.subr.mxu0 %v399
  %1726 = vmatpush1.msra.mxu0 %v398
  %1727 = vmatprep.subr.mxu0 %v395
  %1728 = vmatpush1.msra.mxu0 %v394
  %1729 = vmatprep.subr.mxu0 0.0
  %1730 = vmatpush2.msra.mxu0 0.0
  %1731 = vmatprep.subr.mxu0 0.0
  %1732 = vmatpush2.msra.mxu0 0.0
  %1733 = vmatprep.subr.mxu0 0.0
  %1734 = vmatpush2.msra.mxu0 0.0
  %1735 = vmatprep.subr.mxu0 0.0
  %1736 = vmatpush2.msra.mxu0 0.0
  %1737 = vmatprep.subr.mxu0 0.0
  %1738 = vmatpush2.msra.mxu0 0.0
  %1739 = vmatprep.subr.mxu0 0.0
  %1740 = vmatpush2.msra.mxu0 0.0
  %1741 = vmatprep.subr.mxu0 0.0
  %1742 = vmatpush2.msra.mxu0 0.0
  %1743 = vmatprep.subr.mxu0 0.0
  %1744 = vmatpush2.msra.mxu0 0.0
  %1745 = vmatprep.subr.mxu0 0.0
  %1746 = vmatpush2.msra.mxu0 0.0
  %1747 = vmatprep.subr.mxu0 0.0
  %1748 = vmatpush2.msra.mxu0 0.0
  %1749 = vmatprep.subr.mxu0 0.0
  %1750 = vmatpush2.msra.mxu0 0.0
  %1751 = vmatprep.subr.mxu0 0.0
  %1752 = vmatpush2.msra.mxu0 0.0
  %1753 = vmatprep.subr.mxu0 0.0
  %1754 = vmatpush2.msra.mxu0 0.0
  %1755 = vmatprep.subr.mxu0 0.0
  %1756 = vmatpush2.msra.mxu0 0.0
  %1757 = vmatprep.subr.mxu0 0.0
  %1758 = vmatpush2.msra.mxu0 0.0
  %1759 = vmatprep.subr.mxu0 0.0
  %1760 = vmatpush2.msra.mxu0 0.0
  %1761 = vmatprep.mubr.f32.mxu0 0.0
  %1762 = vmatmul.mubr.f32.gmra.mxu0 %v1689
  %v1763 = vpop.f32.mrf.mxu0
  %v1764 = vadd.f32 0.0, %v1763
  %v1765 = vpop.f32.mrf.mxu0
  %v1766 = vadd.f32 0.0, %v1765
  %1767 = vdwg.mxu0
  %1768 = vmatprep.subr.mxu0 %v457
  %1769 = vmatpush1.msra.mxu0 %v456
  %1770 = vmatprep.subr.mxu0 %v453
  %1771 = vmatpush1.msra.mxu0 %v452
  %1772 = vmatprep.subr.mxu0 %v449
  %1773 = vmatpush1.msra.mxu0 %v448
  %1774 = vmatprep.subr.mxu0 %v445
  %1775 = vmatpush1.msra.mxu0 %v444
  %1776 = vmatprep.subr.mxu0 %v441
  %1777 = vmatpush1.msra.mxu0 %v440
  %1778 = vmatprep.subr.mxu0 %v437
  %1779 = vmatpush1.msra.mxu0 %v436
  %1780 = vmatprep.subr.mxu0 %v433
  %1781 = vmatpush1.msra.mxu0 %v432
  %1782 = vmatprep.subr.mxu0 %v429
  %1783 = vmatpush1.msra.mxu0 %v428
  %1784 = vmatprep.subr.mxu0 %v425
  %1785 = vmatpush1.msra.mxu0 %v424
  %1786 = vmatprep.subr.mxu0 %v421
  %1787 = vmatpush1.msra.mxu0 %v420
  %1788 = vmatprep.subr.mxu0 %v417
  %1789 = vmatpush1.msra.mxu0 %v416
  %1790 = vmatprep.subr.mxu0 %v413
  %1791 = vmatpush1.msra.mxu0 %v412
  %1792 = vmatprep.subr.mxu0 %v409
  %1793 = vmatpush1.msra.mxu0 %v408
  %1794 = vmatprep.subr.mxu0 %v405
  %1795 = vmatpush1.msra.mxu0 %v404
  %1796 = vmatprep.subr.mxu0 %v401
  %1797 = vmatpush1.msra.mxu0 %v400
  %1798 = vmatprep.subr.mxu0 %v397
  %1799 = vmatpush1.msra.mxu0 %v396
  %1800 = vmatprep.subr.mxu0 0.0
  %1801 = vmatpush2.msra.mxu0 0.0
  %1802 = vmatprep.subr.mxu0 0.0
  %1803 = vmatpush2.msra.mxu0 0.0
  %1804 = vmatprep.subr.mxu0 0.0
  %1805 = vmatpush2.msra.mxu0 0.0
  %1806 = vmatprep.subr.mxu0 0.0
  %1807 = vmatpush2.msra.mxu0 0.0
  %1808 = vmatprep.subr.mxu0 0.0
  %1809 = vmatpush2.msra.mxu0 0.0
  %1810 = vmatprep.subr.mxu0 0.0
  %1811 = vmatpush2.msra.mxu0 0.0
  %1812 = vmatprep.subr.mxu0 0.0
  %1813 = vmatpush2.msra.mxu0 0.0
  %1814 = vmatprep.subr.mxu0 0.0
  %1815 = vmatpush2.msra.mxu0 0.0
  %1816 = vmatprep.subr.mxu0 0.0
  %1817 = vmatpush2.msra.mxu0 0.0
  %1818 = vmatprep.subr.mxu0 0.0
  %1819 = vmatpush2.msra.mxu0 0.0
  %1820 = vmatprep.subr.mxu0 0.0
  %1821 = vmatpush2.msra.mxu0 0.0
  %1822 = vmatprep.subr.mxu0 0.0
  %1823 = vmatpush2.msra.mxu0 0.0
  %1824 = vmatprep.subr.mxu0 0.0
  %1825 = vmatpush2.msra.mxu0 0.0
  %1826 = vmatprep.subr.mxu0 0.0
  %1827 = vmatpush2.msra.mxu0 0.0
  %1828 = vmatprep.subr.mxu0 0.0
  %1829 = vmatpush2.msra.mxu0 0.0
  %1830 = vmatprep.subr.mxu0 0.0
  %1831 = vmatpush2.msra.mxu0 0.0
  %1832 = vmatprep.mubr.f32.mxu0 0.0
  %1833 = vmatmul.mubr.f32.gmra.mxu0 %v1689
  %v1834 = vpop.f32.mrf.mxu0
  %v1835 = vadd.f32 0.0, %v1834
  %v1836 = vpop.f32.mrf.mxu0
  %v1837 = vadd.f32 0.0, %v1836
  %1838 = vdwg.mxu0
  %v1839 = vadd.f32 %v1693, %v1764
  %v1840 = vadd.f32 %v1694, %v1766
  %v1841 = vadd.f32 %v1695, %v1835
  %v1842 = vadd.f32 %v1696, %v1837
  %v1843 = vxor.u32 %v1839, 2147483648
  %v1844 = vmul.f32 %v1843, 1.442695
  %v1845 = vpow.pop %v1844
  %v1846 = vadd.f32 %v1845, 1.0
  %v1847 = vrcp.pop %v1846
  %v1848 = vmul.f32 1.0, %v1847
  %v1849 = vxor.u32 %v1840, 2147483648
  %v1850 = vmul.f32 %v1849, 1.442695
  %v1851 = vpow.pop %v1850
  %v1852 = vadd.f32 %v1851, 1.0
  %v1853 = vrcp.pop %v1852
  %v1854 = vmul.f32 1.0, %v1853
  %v1855 = vtanh.pop %v1841
  %v1856 = vxor.u32 %v1842, 2147483648
  %v1857 = vmul.f32 %v1856, 1.442695
  %v1858 = vpow.pop %v1857
  %v1859 = vadd.f32 %v1858, 1.0
  %v1860 = vrcp.pop %v1859
  %v1861 = vmul.f32 1.0, %v1860
  %v1862 = vmul.f32 %v1854, %v1687
  %v1863 = vmul.f32 %v1848, %v1855
  %v1864 = vadd.f32 %v1862, %v1863
  %v1865 = vtanh.pop %v1864
  %v1866 = vmul.f32 %v1861, %v1865
  %1867 = vst [vmem:[%s6] sm:$0xff] %v1866
  %1868 = vst [vmem:[%s7] sm:$0xff] %v1864
  // Predicated region
  $region30: #{lstm_forward.1} parent=0 // pred_check
    _
  $region31: #{lstm_forward.1} parent=0 // pred_check_branch
    %1870 = sbr.rel (0) target = $region33
  $region32: #{lstm_forward.1} parent=0 // pred_region
    _
  $region33: #{lstm_forward.1} parent=0 // pred_fallthru
    _
  // Predicated region
  $region34: #{lstm_forward.1} parent=0 // pred_check
    _
  $region35: #{lstm_forward.1} parent=0 // pred_check_branch
    %1872 = sbr.rel (0) target = $region37
  $region36: #{lstm_forward.1} parent=0 // pred_region
    _
  $region37: #{lstm_forward.1} parent=0 // pred_fallthru
    _
  // Predicated region
  $region38: #{lstm_forward.1} parent=0 // pred_check
    _
  $region39: #{lstm_forward.1} parent=0 // pred_check_branch
    %1874 = sbr.rel (0) target = $region41
  $region40: #{lstm_forward.1} parent=0 // pred_region
    _
  $region41: #{lstm_forward.1} parent=0 // pred_fallthru
    _
  // Predicated region
  $region42: #{lstm_forward.1} parent=0 // pred_check
    _
  $region43: #{lstm_forward.1} parent=0 // pred_check_branch
    %1876 = sbr.rel (0) target = $region45
  $region44: #{lstm_forward.1} parent=0 // pred_region
    _
  $region45: #{lstm_forward.1} parent=0 // pred_fallthru
    _

</llo_original>
